<compile_context>
chip_gen: v7x
topology: tpu7x:2x2x1
jax: 0.10.0
libtpu: 0.0.40
codegen_flags: <defaults>
</compile_context>

<pallas_src>
import math

import jax
import jax.numpy as jnp
from jax import lax
from jax.experimental import pallas as pl
from jax.experimental.pallas import tpu as pltpu

RMS_EPS = 1.1920929e-07         # torch.finfo(float32).eps — F.rms_norm default
NEG_INF = -1e30                 # finite "-inf" (avoids inf-inf NaNs in online softmax)
VMEM_LIMIT = 48 * 1024 * 1024   # fits v7x (64 MiB physical) and raises v5e's 16 MiB default


def _pick_tile(dim, target, unit):
    """Largest multiple of `unit` <= target that divides dim, else the full dim."""
    if dim <= target:
        return dim
    t = (target // unit) * unit
    while t >= unit:
        if dim % t == 0:
            return t
        t -= unit
    return dim


# ----------------------------- QKV projection ------------------------------
def _proj_kernel(x_ref, w_ref, o_ref, acc_ref):
    @pl.when(pl.program_id(2) == 0)
    def _init():
        acc_ref[...] = jnp.zeros_like(acc_ref)

    acc_ref[...] += jnp.dot(x_ref[...], w_ref[...],
                            preferred_element_type=jnp.float32)

    @pl.when(pl.program_id(2) == pl.num_programs(2) - 1)
    def _done():
        o_ref[...] = acc_ref[...].astype(o_ref.dtype)


def qkv_projection(x_flat, w_cat, *, block_m=256, block_n=512, block_k=512):
    M, K = x_flat.shape
    _, N = w_cat.shape
    tm = _pick_tile(M, block_m, 8)
    tn = _pick_tile(N, block_n, 128)
    tk = _pick_tile(K, block_k, 128)
    grid = (M // tm, N // tn, K // tk)
    return pl.pallas_call(
        _proj_kernel,
        out_shape=jax.ShapeDtypeStruct((M, N), jnp.bfloat16),
        grid=grid,
        in_specs=[pl.BlockSpec((tm, tk), lambda i, j, k: (i, k)),
                  pl.BlockSpec((tk, tn), lambda i, j, k: (k, j))],
        out_specs=pl.BlockSpec((tm, tn), lambda i, j, k: (i, j)),
        scratch_shapes=[pltpu.VMEM((tm, tn), jnp.float32)],
        compiler_params=pltpu.CompilerParams(
            dimension_semantics=("parallel", "parallel", "arbitrary"),
            vmem_limit_bytes=VMEM_LIMIT),
    )(x_flat, w_cat)


# ----------------- fused flash-style differential attention ----------------
def _diff_attn_kernel(lam_ref, cq_ref, sq_ref, ck_ref, sk_ref,
                      q1_ref, q2_ref, k1_ref, k2_ref, v_ref, o_ref,
                      q_sc, m_sc, l_sc, acc_sc):
    qi = pl.program_id(2)
    ki = pl.program_id(3)
    nk = pl.num_programs(3)
    TQ, Dh = q1_ref.shape
    TK = k1_ref.shape[0]
    scale = 1.0 / math.sqrt(Dh)

    def prep(x_ref, cos_ref, sin_ref):
        # RMS-norm over head_dim (f32) + rotary via a single full-width roll
        # (cos_ref = [cos|cos], sin_ref = [sin|-sin]); single K=Dh contraction later.
        xf = x_ref[...].astype(jnp.float32)
        inv = lax.rsqrt(jnp.mean(xf * xf, axis=-1, keepdims=True) + RMS_EPS)
        xn = xf * inv
        rot = pltpu.roll(xn, Dh // 2, 1)                       # [x2 | x1]
        y = (xn * cos_ref[...].astype(jnp.float32)
             + rot * sin_ref[...].astype(jnp.float32))
        return y.astype(jnp.bfloat16)

    @pl.when(ki == 0)
    def _init():
        m_sc[...] = jnp.full(m_sc.shape, NEG_INF, jnp.float32)
        l_sc[...] = jnp.zeros(l_sc.shape, jnp.float32)
        acc_sc[...] = jnp.zeros(acc_sc.shape, jnp.float32)
        q_sc[:TQ, :] = prep(q1_ref, cq_ref, sq_ref)
        q_sc[TQ:, :] = prep(q2_ref, cq_ref, sq_ref)

    # Skip KV blocks that lie entirely above the causal diagonal.
    @pl.when(ki * TK < (qi + 1) * TQ)
    def _step():
        k1p = prep(k1_ref, ck_ref, sk_ref)
        k2p = prep(k2_ref, ck_ref, sk_ref)
        qs = q_sc[...]
        dn = (((1,), (1,)), ((), ()))                          # contract full head_dim
        s1 = lax.dot_general(qs[:TQ], k1p, dn,
                             preferred_element_type=jnp.float32) * scale
        s2 = lax.dot_general(qs[TQ:], k2p, dn,
                             preferred_element_type=jnp.float32) * scale

        row = qi * TQ + lax.broadcasted_iota(jnp.int32, (TQ, TK), 0)
        col = ki * TK + lax.broadcasted_iota(jnp.int32, (TQ, TK), 1)
        causal = row >= col
        s1 = jnp.where(causal, s1, NEG_INF)
        s2 = jnp.where(causal, s2, NEG_INF)
        s = jnp.concatenate([s1, s2], axis=0)                  # (2*TQ, TK)

        m_prev = m_sc[...]
        m_new = jnp.maximum(m_prev, jnp.max(s, axis=-1, keepdims=True))
        alpha = jnp.exp(m_prev - m_new)
        p = jnp.exp(s - m_new)
        l_sc[...] = alpha * l_sc[...] + jnp.sum(p, axis=-1, keepdims=True)
        # Both branches share the same V tile -> one (2*TQ, TK)@(TK, 2*Dh) matmul.
        pv = jnp.dot(p.astype(jnp.bfloat16), v_ref[...],
                     preferred_element_type=jnp.float32)
        acc_sc[...] = alpha * acc_sc[...] + pv
        m_sc[...] = m_new

    @pl.when(ki == nk - 1)
    def _finalize():
        inv_l = pl.reciprocal(l_sc[...], approx=True)
        y = acc_sc[...] * inv_l
        lam = lam_ref[0]
        o_ref[...] = (y[:TQ] - lam * y[TQ:]).astype(o_ref.dtype)


def diff_attention(lam_full, cos_cat, sin_sgn, q, k, v, *, block_q=128, block_k=128):
    # q, k: (B, H, T, Dh) bf16;  v: (B, Hh, T, 2*Dh) bf16.
    B, H, T, Dh = q.shape
    Hh = H // 2
    TQ = _pick_tile(T, block_q, 8)
    TK = _pick_tile(T, block_k, 8)
    grid = (B, Hh, T // TQ, T // TK)

    qb = (None, None, TQ, Dh)
    kb = (None, None, TK, Dh)
    return pl.pallas_call(
        _diff_attn_kernel,
        out_shape=jax.ShapeDtypeStruct((B, Hh, T, 2 * Dh), jnp.bfloat16),
        grid=grid,
        in_specs=[
            pl.BlockSpec(memory_space=pltpu.MemorySpace.SMEM),             # lambda_full
            pl.BlockSpec((TQ, Dh), lambda b, h, i, j: (i, 0)),             # cos (q rows)
            pl.BlockSpec((TQ, Dh), lambda b, h, i, j: (i, 0)),             # sin (q rows)
            pl.BlockSpec((TK, Dh), lambda b, h, i, j: (j, 0)),             # cos (k rows)
            pl.BlockSpec((TK, Dh), lambda b, h, i, j: (j, 0)),             # sin (k rows)
            pl.BlockSpec(qb, lambda b, h, i, j: (b, h, i, 0)),             # q branch 1
            pl.BlockSpec(qb, lambda b, h, i, j: (b, h + Hh, i, 0)),        # q branch 2
            pl.BlockSpec(kb, lambda b, h, i, j: (b, h, j, 0)),             # k branch 1
            pl.BlockSpec(kb, lambda b, h, i, j: (b, h + Hh, j, 0)),        # k branch 2
            pl.BlockSpec((None, None, TK, 2 * Dh), lambda b, h, i, j: (b, h, j, 0)),  # v
        ],
        out_specs=pl.BlockSpec((None, None, TQ, 2 * Dh),
                               lambda b, h, i, j: (b, h, i, 0)),
        scratch_shapes=[
            pltpu.VMEM((2 * TQ, Dh), jnp.bfloat16),      # prepped q (both branches)
            pltpu.VMEM((2 * TQ, 1), jnp.float32),        # running max
            pltpu.VMEM((2 * TQ, 1), jnp.float32),        # running sum
            pltpu.VMEM((2 * TQ, 2 * Dh), jnp.float32),   # output accumulator
        ],
        compiler_params=pltpu.CompilerParams(
            dimension_semantics=("parallel", "parallel", "parallel", "arbitrary"),
            vmem_limit_bytes=VMEM_LIMIT),
    )(lam_full, cos_cat, sin_sgn, cos_cat, sin_sgn, q, q, k, k, v)


# ------------------------------ module glue --------------------------------
class MixerDiffAttentionPallas:
    def __init__(self, d_model, n_heads, expand_factor=1, layer_depth=0, key=None):
        assert d_model % n_heads == 0 and n_heads % 2 == 0
        self.n_heads = n_heads
        self.d_model = d_model
        self.expand_factor = expand_factor
        self.head_dim = d_model // n_heads * expand_factor
        self.lambda_init = 0.8 - 0.6 * math.exp(-0.3 * layer_depth)
        hd2 = self.head_dim // 2
        HD = n_heads * self.head_dim
        keys = jax.random.split(key, 7)
        init_std = 1.0 / math.sqrt(d_model)
        self.w_q = jax.random.normal(keys[0], (d_model, HD), jnp.float32) * init_std
        self.w_k = jax.random.normal(keys[1], (d_model, HD), jnp.float32) * init_std
        self.w_v = jax.random.normal(keys[2], (d_model, HD), jnp.float32) * init_std
        # Pre-concatenated projection weight (built once, not per forward call).
        self.w_cat = jnp.concatenate([self.w_q, self.w_k, self.w_v], axis=1)
        self.lambda_q1 = jax.random.normal(keys[3], (hd2,), jnp.float32) * 0.1
        self.lambda_k1 = jax.random.normal(keys[4], (hd2,), jnp.float32) * 0.1
        self.lambda_q2 = jax.random.normal(keys[5], (hd2,), jnp.float32) * 0.1
        self.lambda_k2 = jax.random.normal(keys[6], (hd2,), jnp.float32) * 0.1

    def rotary_tables(self, T):
        Dh = self.head_dim
        inv_freq = 1.0 / (10000.0 ** (jnp.arange(0, Dh, 2, dtype=jnp.float32) / Dh))
        t = jnp.arange(T, dtype=jnp.float32)
        freqs = jnp.outer(t, inv_freq)
        return jnp.cos(freqs).astype(jnp.bfloat16), jnp.sin(freqs).astype(jnp.bfloat16)

    def __call__(self, x):
        B, T, C = x.shape
        H, Dh = self.n_heads, self.head_dim
        Hh = H // 2
        HD = H * Dh

        # Tiled QKV projection, bf16 output (halves HBM traffic into attention).
        qkv = qkv_projection(x.reshape(B * T, C), self.w_cat)      # (B*T, 3*HD) bf16
        qkv = qkv.reshape(B, T, 3, H, Dh)
        # TODO(synk): these head-major transposes could be folded into the projection
        # out_spec index_map; kept in XLA to respect the (8,128) lane-block constraint.
        q = jnp.transpose(qkv[:, :, 0], (0, 2, 1, 3))              # (B, H, T, Dh)
        k = jnp.transpose(qkv[:, :, 1], (0, 2, 1, 3))              # (B, H, T, Dh)
        v = jnp.transpose(qkv[:, :, 2].reshape(B, T, Hh, 2 * Dh),
                          (0, 2, 1, 3))                            # (B, Hh, T, 2*Dh)

        cos, sin = self.rotary_tables(T)                           # (T, Dh/2) bf16
        cos_cat = jnp.concatenate([cos, cos], axis=-1)             # (T, Dh)
        sin_sgn = jnp.concatenate([sin, -sin], axis=-1)            # (T, Dh)

        lam1 = jnp.exp(jnp.sum(self.lambda_q1 * self.lambda_k1)).astype(jnp.bfloat16)
        lam2 = jnp.exp(jnp.sum(self.lambda_q2 * self.lambda_k2)).astype(jnp.bfloat16)
        lam_full = (lam1 - lam2 + self.lambda_init).astype(jnp.float32).reshape(1)

        y = diff_attention(lam_full, cos_cat, sin_sgn, q, k, v)    # (B, Hh, T, 2*Dh)
        y = jnp.transpose(y, (0, 2, 1, 3)).reshape(B, T, HD)
        return y


# --------------------------- pure-JAX reference -----------------------------
def reference_forward(mod, x):
    B, T, C = x.shape
    H, Dh = mod.n_heads, mod.head_dim
    Hh = H // 2
    xf = x.reshape(B * T, C)
    q = (xf @ mod.w_q).reshape(B, T, H, Dh)
    k = (xf @ mod.w_k).reshape(B, T, H, Dh)
    v = (xf @ mod.w_v).reshape(B, T, Hh, 2 * Dh)
    cos, sin = mod.rotary_tables(T)
    cos = cos[None, :, None, :]
    sin = sin[None, :, None, :]

    def rms(a):
        return a * lax.rsqrt(jnp.mean(a * a, axis=-1, keepdims=True) + RMS_EPS)

    def rope(a):
        d = Dh // 2
        x1, x2 = a[..., :d], a[..., d:]
        y1 = x1 * cos + x2 * sin
        y2 = x1 * (-sin) + x2 * cos
        return jnp.concatenate([y1, y2], axis=-1).astype(a.dtype)

    q = rope(rms(q))
    k = rope(rms(k))
    q = q.reshape(B, T, 2, Hh, Dh)
    k = k.reshape(B, T, 2, Hh, Dh)
    q1, q2 = q[:, :, 0], q[:, :, 1]
    k1, k2 = k[:, :, 0], k[:, :, 1]
    vb = v.astype(jnp.bfloat16)
    mask = jnp.tril(jnp.ones((T, T), dtype=bool))[None, None]

    def attn(qq, kk):
        qq = qq.astype(jnp.bfloat16)
        kk = kk.astype(jnp.bfloat16)
        s = jnp.einsum('bthd,bshd->bhts', qq, kk,
                       preferred_element_type=jnp.float32) / math.sqrt(Dh)
        s = jnp.where(mask, s, -jnp.inf)
        m = jnp.max(s, axis=-1, keepdims=True)
        p = jnp.exp(s - m)
        p = p / jnp.sum(p, axis=-1, keepdims=True)
        return jnp.einsum('bhts,bshd->bthd', p.astype(jnp.bfloat16), vb,
                          preferred_element_type=jnp.float32).astype(jnp.bfloat16)

    y1 = attn(q1, k1)
    y2 = attn(q2, k2)
    lam1 = jnp.exp(jnp.sum(mod.lambda_q1 * mod.lambda_k1)).astype(y1.dtype)
    lam2 = jnp.exp(jnp.sum(mod.lambda_q2 * mod.lambda_k2)).astype(y2.dtype)
    lam_full = lam1 - lam2 + mod.lambda_init
    y = y1 - lam_full * y2
    return y.reshape(B, T, H * Dh)


if __name__ == "__main__":
    key = jax.random.PRNGKey(0)
    kx, kp = jax.random.split(key)
    # Small but lane-aligned shapes: head_dim=128, two head-pairs, two q/kv blocks.
    B, T, d_model, n_heads, expand_factor = 2, 256, 256, 4, 2

    x = jax.random.normal(kx, (B, T, d_model), jnp.float32)
    mod = MixerDiffAttentionPallas(d_model, n_heads, expand_factor,
                                   layer_depth=0, key=kp)

    y = jax.block_until_ready(mod(x))
    y_ref = jax.block_until_ready(reference_forward(mod, x))

    assert y.shape == (B, T, d_model * expand_factor)
    assert y.dtype == jnp.bfloat16
    yf = y.astype(jnp.float32)
    rf = y_ref.astype(jnp.float32)
    assert bool(jnp.isfinite(yf).all())
    # bf16 q/k/v I/O in the kernel vs f32-until-attention in the reference:
    # compare with a bf16-appropriate mixed relative/absolute criterion.
    err = jnp.max(jnp.abs(yf - rf) / (1.0 + jnp.abs(rf)))
    assert float(err) < 5e-2, f"mismatch vs reference: {float(err)}"
    print("KERNEL_OK")
</pallas_src>

<mosaic_0001>
module attributes {stable_mosaic.version = 11 : i64} {
  func.func @_proj_kernel(%arg0: i32, %arg1: i32, %arg2: i32, %arg3: memref<256x256xf32, #tpu.memory_space<vmem>>, %arg4: memref<256x512xf32, #tpu.memory_space<vmem>>, %arg5: memref<256x512xbf16, #tpu.memory_space<vmem>>, %arg6: memref<256x512xf32, #tpu.memory_space<vmem>>) attributes {dimension_semantics = [#tpu.dimension_semantics<parallel>, #tpu.dimension_semantics<parallel>, #tpu.dimension_semantics<arbitrary>], iteration_bounds = array<i64: 2, 3, 1>, scalar_prefetch = 0 : i64, scratch_operands = 1 : i64, tpu.core_type = #tpu.core_type<tc>, window_params = [{transform_indices = @transform_0, window_bounds = array<i64: 256, 256>}, {transform_indices = @transform_1, window_bounds = array<i64: 256, 512>}, {transform_indices = @transform_2, window_bounds = array<i64: 256, 512>}]} {
    %c0_i32 = arith.constant 0 : i32
    %0 = arith.cmpi eq, %arg2, %c0_i32 : i32
    %1 = arith.extui %0 : i1 to i32
    %c0_i32_0 = arith.constant 0 : i32
    %2 = arith.cmpi ne, %1, %c0_i32_0 : i32
    scf.if %2 {
      %cst_10 = arith.constant 0.000000e+00 : f32
      %12 = vector.broadcast %cst_10 : f32 to vector<256x512xf32>
      %c0_11 = arith.constant 0 : index
      %c0_12 = arith.constant 0 : index
      %13 = vector.load %arg6[%c0_11, %c0_12] : memref<256x512xf32, #tpu.memory_space<vmem>>, vector<256x512xf32>
      tpu.vector_store %arg6[%c0_11, %c0_12], %12 {strides = array<i32>} : memref<256x512xf32, #tpu.memory_space<vmem>>, vector<256x512xf32>,
    } else {
    }
    %c0 = arith.constant 0 : index
    %c0_1 = arith.constant 0 : index
    %3 = vector.load %arg6[%c0, %c0_1] : memref<256x512xf32, #tpu.memory_space<vmem>>, vector<256x512xf32>
    %c0_2 = arith.constant 0 : index
    %c0_3 = arith.constant 0 : index
    %4 = vector.load %arg3[%c0_2, %c0_3] : memref<256x256xf32, #tpu.memory_space<vmem>>, vector<256x256xf32>
    %c0_4 = arith.constant 0 : index
    %c0_5 = arith.constant 0 : index
    %5 = vector.load %arg4[%c0_4, %c0_5] : memref<256x512xf32, #tpu.memory_space<vmem>>, vector<256x512xf32>
    %cst = arith.constant dense<0.000000e+00> : vector<256x512xf32>
    %6 = tpu.matmul %4, %5, %cst {dimension_numbers = #tpu.dot_dimension_numbers<[1], [0], [0], [1], [0, 0, 1, 1], [], []>} : vector<256x256xf32>, vector<256x512xf32>, vector<256x512xf32> -> vector<256x512xf32>
    %7 = arith.addf %3, %6 : vector<256x512xf32>
    %c0_6 = arith.constant 0 : index
    %c0_7 = arith.constant 0 : index
    %8 = vector.load %arg6[%c0_6, %c0_7] : memref<256x512xf32, #tpu.memory_space<vmem>>, vector<256x512xf32>
    tpu.vector_store %arg6[%c0_6, %c0_7], %7 {strides = array<i32>} : memref<256x512xf32, #tpu.memory_space<vmem>>, vector<256x512xf32>,
    %c0_i32_8 = arith.constant 0 : i32
    %9 = arith.cmpi eq, %arg2, %c0_i32_8 : i32
    %10 = arith.extui %9 : i1 to i32
    %c0_i32_9 = arith.constant 0 : i32
    %11 = arith.cmpi ne, %10, %c0_i32_9 : i32
    scf.if %11 {
      %c0_10 = arith.constant 0 : index
      %c0_11 = arith.constant 0 : index
      %12 = vector.load %arg6[%c0_10, %c0_11] : memref<256x512xf32, #tpu.memory_space<vmem>>, vector<256x512xf32>
      %13 = arith.truncf %12 : vector<256x512xf32> to vector<256x512xbf16>
      %c0_12 = arith.constant 0 : index
      %c0_13 = arith.constant 0 : index
      %14 = vector.load %arg5[%c0_12, %c0_13] : memref<256x512xbf16, #tpu.memory_space<vmem>>, vector<256x512xbf16>
      tpu.vector_store %arg5[%c0_12, %c0_13], %13 {strides = array<i32>} : memref<256x512xbf16, #tpu.memory_space<vmem>>, vector<256x512xbf16>,
    } else {
    }
    return
  }
  func.func @transform_0(%arg0: i32, %arg1: i32, %arg2: i32) -> (i32, i32) {
    %c0_i32 = arith.constant 0 : i32
    return %arg0, %arg2 : i32, i32
  }
  func.func @transform_1(%arg0: i32, %arg1: i32, %arg2: i32) -> (i32, i32) {
    %c0_i32 = arith.constant 0 : i32
    return %arg2, %arg1 : i32, i32
  }
  func.func @transform_2(%arg0: i32, %arg1: i32, %arg2: i32) -> (i32, i32) {
    %c0_i32 = arith.constant 0 : i32
    return %arg0, %arg1 : i32, i32
  }
}

</mosaic_0001>

<llo_original>
// kernel: tpu_custom_call.1
$region0: #{tpu_custom_call.1}
  #allocation0 [shape = 'u32[]', space=smem, size = 0x4, offset = 0x4, fixed_abs, tag = 'smem constant byte address 0x4 - core index']
  #allocation1 [shape = 'u32[144,128]{1,0:T(1,128)}', space=vmem, size = 0x12000, scoped, tag = 'internal scratch']
  #allocation2 [shape = 'f32[256,512]{1,0:T(8,128)}', space=vmem, size = 0x80000, scoped, tag = 'scratch operand']
  %s0 = inlined_call_operand.hbm [shape: f32[512,256], index: 0, kind: input, shape index: {}]
  %s1 = inlined_call_operand.hbm [shape: f32[256,1536], index: 1, kind: input, shape index: {}]
  %s2 = inlined_call_operand.hbm [shape: bf16[512,1536], index: 2, kind: output, shape index: {}]
  %s3 = sld [smem:[#allocation0]]
  $region57: #{tpu_custom_call.1} parent=0
    _
  %s5 = ssub.s32 1, %s3
  %s6 = scalar_select 0, %s5, %s3
  $region1: #{tpu_custom_call.1} parent=0
    #allocation3 [shape = 'u8[524288]{0}', space=vmem, size = 0x80000, scoped, tag = 'input window, operand 0']
    #allocation4 [shape = 's32[2]{0}', space=sflag, size = 0x8, scoped, tag = 'scoped memory for tpu_custom_call.1']
    #allocation5 [shape = 's32[2]{0}', space=sflag, size = 0x8, scoped, tag = 'scoped memory for tpu_custom_call.1']
    #allocation6 [shape = 'u8[1048576]{0}', space=vmem, size = 0x100000, scoped, tag = 'input window, operand 1']
    #allocation7 [shape = 's32[2]{0}', space=sflag, size = 0x8, scoped, tag = 'scoped memory for tpu_custom_call.1']
    #allocation8 [shape = 'u8[524288]{0}', space=vmem, size = 0x80000, scoped, tag = 'output window, operand 0']
    %7 = vsyncpa [#allocation4], 0
    %s8 = scalar_lea.sflag [#allocation4], 1
    %9 = vsyncpa %s8, 0
    %10 = vsyncpa [#allocation7], 0
    %s11 = scalar_lea.sflag [#allocation7], 1
    %12 = vsyncpa %s11, 0
    %13 = vsyncpa [#allocation5], 0
    %s14 = scalar_lea.sflag [#allocation5], 1
    %15 = vsyncpa %s14, 0
    loop: start=0, step=1, limit=8
    $region2: #{tpu_custom_call.1} parent=1 // loop_pre_header
      _
    $region3: #{tpu_custom_call.1} parent=1 // loop_header
      %s17 = sphi 0, %s21
      %p18 = scmp.ge.s32.totalorder %s17, 8
      %s24 = sphi 0, %s43
      %s25 = sphi 0, %s39
      %s26 = sphi 0, %s35
      %s27 = sphi 0, %s24
      %s28 = sphi 0, %s25
      %s29 = sphi 0, %s26
      %s30 = sphi 0, %s27
      %s31 = sphi 0, %s28
      %s32 = sphi 0, %s29
      %s48 = sphi 0, %s50
      %s51 = sphi 0, %s48
      %s52 = sphi 0, %s51
      %s68 = sphi 0, %s52
      %s76 = sphi 0, %s78
      %s79 = sphi 0, %s76
      %s80 = sphi 0, %s79
      %s96 = sphi 0, %s80
      %s104 = sphi 0, %s106
      %s107 = sphi 0, %s104
      %s108 = sphi 0, %s107
      %s124 = sphi 0, %s108
    $region4: #{tpu_custom_call.1} parent=1 // loop_header_branch
      %20 = sbr.rel (%p18) target = $region8
    $region5: #{tpu_custom_call.1} parent=1 // loop_body
      %s22 = ssub.s32 %s17, 1
      %s23 = ssub.s32 %s17, 2
      %s33 = sadd.s32 1, %s26
      %p34 = scmp.ge.s32.totalorder %s33, 1
      %s35 = scalar_select %p34, 0, %s33
      %s36 = sadd.s32 1, %s25
      %s37 = scalar_select %p34, %s36, %s25
      %p38 = scmp.ge.s32.totalorder %s37, 3
      %s39 = scalar_select %p38, 0, %s37
      %s40 = sadd.s32 1, %s24
      %s41 = scalar_select %p38, %s40, %s24
      %p42 = scmp.ge.s32.totalorder %s41, 2
      %s43 = scalar_select %p42, 0, %s41
      %s44 = ssub.s32 %s24, %s43
      %s45 = ssub.s32 %s26, %s35
      %s46 = sor.u32 %s44, %s45
      %p47 = scmp.eq.s32.totalorder %s46, 0
      %s49 = sadd.s32 %s48, 1
      %s50 = scalar_select %p47, %s48, %s49
      %p53 = pneg %p47
      %p54 = scmp.eq.s32.totalorder %s17, 5
      %p55 = por %p53, %p54
      %p56 = scmp.ne.s32.totalorder %s48, %s51
      %p57 = scmp.eq.s32.totalorder %s17, 0
      %p58 = por %p56, %p57
      %p59 = scmp.ne.s32.totalorder %s48, %s51
      %p60 = scmp.eq.s32.totalorder %s22, 5
      %p61 = por %p59, %p60
      %p62 = scmp.ne.s32.totalorder %s51, %s52
      %p63 = scmp.eq.s32.totalorder %s22, 0
      %p64 = por %p62, %p63
      %p65 = scmp.ne.s32.totalorder %s51, %s52
      %p66 = scmp.eq.s32.totalorder %s23, 5
      %p67 = por %p65, %p66
      %p69 = scmp.ne.s32.totalorder %s52, %s68
      %p70 = scmp.eq.s32.totalorder %s23, 0
      %p71 = por %p69, %p70
      %s72 = ssub.s32 %s26, %s35
      %s73 = ssub.s32 %s25, %s39
      %s74 = sor.u32 %s72, %s73
      %p75 = scmp.eq.s32.totalorder %s74, 0
      %s77 = sadd.s32 %s76, 1
      %s78 = scalar_select %p75, %s76, %s77
      %p81 = pneg %p75
      %p82 = scmp.eq.s32.totalorder %s17, 5
      %p83 = por %p81, %p82
      %p84 = scmp.ne.s32.totalorder %s76, %s79
      %p85 = scmp.eq.s32.totalorder %s17, 0
      %p86 = por %p84, %p85
      %p87 = scmp.ne.s32.totalorder %s76, %s79
      %p88 = scmp.eq.s32.totalorder %s22, 5
      %p89 = por %p87, %p88
      %p90 = scmp.ne.s32.totalorder %s79, %s80
      %p91 = scmp.eq.s32.totalorder %s22, 0
      %p92 = por %p90, %p91
      %p93 = scmp.ne.s32.totalorder %s79, %s80
      %p94 = scmp.eq.s32.totalorder %s23, 5
      %p95 = por %p93, %p94
      %p97 = scmp.ne.s32.totalorder %s80, %s96
      %p98 = scmp.eq.s32.totalorder %s23, 0
      %p99 = por %p97, %p98
      %s100 = ssub.s32 %s24, %s43
      %s101 = ssub.s32 %s25, %s39
      %s102 = sor.u32 %s100, %s101
      %p103 = scmp.eq.s32.totalorder %s102, 0
      %s105 = sadd.s32 %s104, 1
      %s106 = scalar_select %p103, %s104, %s105
      %p109 = pneg %p103
      %p110 = scmp.eq.s32.totalorder %s17, 5
      %p111 = por %p109, %p110
      %p112 = scmp.ne.s32.totalorder %s104, %s107
      %p113 = scmp.eq.s32.totalorder %s17, 0
      %p114 = por %p112, %p113
      %p115 = scmp.ne.s32.totalorder %s104, %s107
      %p116 = scmp.eq.s32.totalorder %s22, 5
      %p117 = por %p115, %p116
      %p118 = scmp.ne.s32.totalorder %s107, %s108
      %p119 = scmp.eq.s32.totalorder %s22, 0
      %p120 = por %p118, %p119
      %p121 = scmp.ne.s32.totalorder %s107, %s108
      %p122 = scmp.eq.s32.totalorder %s23, 5
      %p123 = por %p121, %p122
      %p125 = scmp.ne.s32.totalorder %s108, %s124
      %p126 = scmp.eq.s32.totalorder %s23, 0
      %p127 = por %p125, %p126
      %p128 = scmp.le.s32.totalorder 1, %s17
      %p129 = scmp.lt.s32.totalorder %s17, 7
      %p130 = pnand %p128, %p129
      %p131 = pneg %p130
      // Predicated region
      $region9: #{tpu_custom_call.1} parent=5 // pred_check
        _
      $region10: #{tpu_custom_call.1} parent=5 // pred_check_branch
        %133 = sbr.rel (%p130) target = $region12
      $region11: #{tpu_custom_call.1} parent=5 // pred_region
        %s134 = ssub.s32 %s17, 1
      $region12: #{tpu_custom_call.1} parent=5 // pred_fallthru
        _
      %p135 = scmp.lt.s32.totalorder %s17, 6
      // Predicated region
      $region13: #{tpu_custom_call.1} parent=5 // pred_check
        %p136 = pneg %p135
      $region14: #{tpu_custom_call.1} parent=5 // pred_check_branch
        %138 = sbr.rel (%p136) target = $region16
      $region15: #{tpu_custom_call.1} parent=5 // pred_region
        // Predicated region
        $region17: #{tpu_custom_call.1} parent=15 // pred_check
          %p139 = pneg %p58
        $region18: #{tpu_custom_call.1} parent=15 // pred_check_branch
          %141 = sbr.rel (%p139) target = $region20
        $region19: #{tpu_custom_call.1} parent=15 // pred_region
          %s142 = sand.u32 %s48, 1
          %s143 = scalar_lea.sflag [#allocation4], %s142
          %s144 = sand.u32 %s48, 1
          %s145 = smul.addr %s144, 512
          %s146 = scalar_lea.vmem [#allocation3], %s145
          %s147 = smul.u32 32, %s24
          %s148 = smul.u32 2, %s26
          %s150 = ssub.s32 8192, 8192
          %151 = vsyncadd %s143, %s150
          %s152 = smul.addr %s147, 2
          %s153 = sadd.s32 %s148, %s152
          %s154 = smul.addr %s153, 128
          %s155 = scalar_lea.hbm %s0, %s154
          %s156 = sshll.u32 %s146, 4
          %s157 = int_to_ptr.vmem [resolvable:$true] %s156
          %162 = dma.hbm_to_vmem [thread:$0]  %s155, 8192, %s157, %s143, 256, 256, 16
        $region20: #{tpu_custom_call.1} parent=15 // pred_fallthru
          _
        // Predicated region
        $region21: #{tpu_custom_call.1} parent=15 // pred_check
          %p163 = pneg %p86
        $region22: #{tpu_custom_call.1} parent=15 // pred_check_branch
          %165 = sbr.rel (%p163) target = $region24
        $region23: #{tpu_custom_call.1} parent=15 // pred_region
          %s166 = sand.u32 %s76, 1
          %s167 = scalar_lea.sflag [#allocation7], %s166
          %s168 = sand.u32 %s76, 1
          %s169 = smul.addr %s168, 1024
          %s170 = scalar_lea.vmem [#allocation6], %s169
          %s171 = smul.u32 32, %s26
          %s172 = smul.u32 4, %s25
          %s174 = ssub.s32 16384, 16384
          %175 = vsyncadd %s167, %s174
          %s176 = smul.addr %s171, 12
          %s177 = sadd.s32 %s172, %s176
          %s178 = smul.addr %s177, 128
          %s179 = scalar_lea.hbm %s1, %s178
          %s180 = sshll.u32 %s170, 4
          %s181 = int_to_ptr.vmem [resolvable:$true] %s180
          %186 = dma.hbm_to_vmem [thread:$0]  %s179, 16384, %s181, %s167, 1536, 512, 32
        $region24: #{tpu_custom_call.1} parent=15 // pred_fallthru
          _
      $region16: #{tpu_custom_call.1} parent=5 // pred_fallthru
        _
      %p187 = scmp.le.s32.totalorder 1, %s17
      %p188 = scmp.lt.s32.totalorder %s17, 7
      %p189 = pnand %p187, %p188
      %p190 = pneg %p189
      // Predicated region
      $region25: #{tpu_custom_call.1} parent=5 // pred_check
        _
      $region26: #{tpu_custom_call.1} parent=5 // pred_check_branch
        %192 = sbr.rel (%p189) target = $region28
      $region27: #{tpu_custom_call.1} parent=5 // pred_region
        %s193 = ssub.s32 %s17, 1
        %s194 = sand.u32 %s51, 1
        %s195 = scalar_lea.sflag [#allocation4], %s194
        %s196 = sand.u32 %s51, 1
        %s197 = smul.addr %s196, 512
        %s198 = scalar_lea.vmem [#allocation3], %s197
        // Predicated region
        $region29: #{tpu_custom_call.1} parent=27 // pred_check
          %p199 = pneg %p64
        $region30: #{tpu_custom_call.1} parent=27 // pred_check_branch
          %201 = sbr.rel (%p199) target = $region32
        $region31: #{tpu_custom_call.1} parent=27 // pred_region
          %202 = dma.done %s195, 8192
        $region32: #{tpu_custom_call.1} parent=27 // pred_fallthru
          _
        %s203 = sand.u32 %s79, 1
        %s204 = scalar_lea.sflag [#allocation7], %s203
        %s205 = sand.u32 %s79, 1
        %s206 = smul.addr %s205, 1024
        %s207 = scalar_lea.vmem [#allocation6], %s206
        // Predicated region
        $region33: #{tpu_custom_call.1} parent=27 // pred_check
          %p208 = pneg %p92
        $region34: #{tpu_custom_call.1} parent=27 // pred_check_branch
          %210 = sbr.rel (%p208) target = $region36
        $region35: #{tpu_custom_call.1} parent=27 // pred_region
          %211 = dma.done %s204, 16384
        $region36: #{tpu_custom_call.1} parent=27 // pred_fallthru
          _
        %s212 = sand.u32 %s51, 1
        %s213 = scalar_lea.sflag [#allocation4], %s212
        %s214 = sand.u32 %s51, 1
        %s215 = smul.addr %s214, 512
        %s216 = scalar_lea.vmem [#allocation3], %s215
        %p217 = pneg %p64
        %p218 = pneg %p61
        %s219 = sand.u32 %s79, 1
        %s220 = scalar_lea.sflag [#allocation7], %s219
        %s221 = sand.u32 %s79, 1
        %s222 = smul.addr %s221, 1024
        %s223 = scalar_lea.vmem [#allocation6], %s222
        %p224 = pneg %p92
        %p225 = pneg %p89
        %p226 = pneg %p120
        %p227 = pneg %p117
        %s228 = sand.u32 %s107, 1
        %s229 = scalar_lea.sflag [#allocation5], %s228
        %s230 = sand.u32 %s107, 1
        %s231 = smul.addr %s230, 512
        %s232 = scalar_lea.vmem [#allocation8], %s231
        %s233 = smul.u32 32, %s27
        %s234 = smul.u32 2, %s29
        %s235 = smul.u32 32, %s29
        %s236 = smul.u32 4, %s28
        %s237 = smul.u32 32, %s27
        %s238 = smul.u32 4, %s28
        %p239 = scmp.eq.s32.totalorder %s29, 0
        // Predicated region
        $region37: #{tpu_custom_call.1} parent=27 // pred_check
          %p240 = pneg %p239
        $region38: #{tpu_custom_call.1} parent=27 // pred_check_branch
          %242 = sbr.rel (%p240) target = $region40
        $region39: #{tpu_custom_call.1} parent=27 // pred_region
          %243 = vst [vmem:[#allocation2] sm:$0xff] 0.0
          %244 = vst [vmem:[#allocation2 + $0x8] sm:$0xff] 0.0
          %245 = vst [vmem:[#allocation2 + $0x10] sm:$0xff] 0.0
          %246 = vst [vmem:[#allocation2 + $0x18] sm:$0xff] 0.0
          %247 = vst [vmem:[#allocation2 + $0x20] sm:$0xff] 0.0
          %248 = vst [vmem:[#allocation2 + $0x28] sm:$0xff] 0.0
          %249 = vst [vmem:[#allocation2 + $0x30] sm:$0xff] 0.0
          %250 = vst [vmem:[#allocation2 + $0x38] sm:$0xff] 0.0
          %251 = vst [vmem:[#allocation2 + $0x40] sm:$0xff] 0.0
          %252 = vst [vmem:[#allocation2 + $0x48] sm:$0xff] 0.0
          %253 = vst [vmem:[#allocation2 + $0x50] sm:$0xff] 0.0
          %254 = vst [vmem:[#allocation2 + $0x58] sm:$0xff] 0.0
          %255 = vst [vmem:[#allocation2 + $0x60] sm:$0xff] 0.0
          %256 = vst [vmem:[#allocation2 + $0x68] sm:$0xff] 0.0
          %257 = vst [vmem:[#allocation2 + $0x70] sm:$0xff] 0.0
          %258 = vst [vmem:[#allocation2 + $0x78] sm:$0xff] 0.0
          %259 = vst [vmem:[#allocation2 + $0x80] sm:$0xff] 0.0
          %260 = vst [vmem:[#allocation2 + $0x88] sm:$0xff] 0.0
          %261 = vst [vmem:[#allocation2 + $0x90] sm:$0xff] 0.0
          %262 = vst [vmem:[#allocation2 + $0x98] sm:$0xff] 0.0
          %263 = vst [vmem:[#allocation2 + $0xa0] sm:$0xff] 0.0
          %264 = vst [vmem:[#allocation2 + $0xa8] sm:$0xff] 0.0
          %265 = vst [vmem:[#allocation2 + $0xb0] sm:$0xff] 0.0
          %266 = vst [vmem:[#allocation2 + $0xb8] sm:$0xff] 0.0
          %267 = vst [vmem:[#allocation2 + $0xc0] sm:$0xff] 0.0
          %268 = vst [vmem:[#allocation2 + $0xc8] sm:$0xff] 0.0
          %269 = vst [vmem:[#allocation2 + $0xd0] sm:$0xff] 0.0
          %270 = vst [vmem:[#allocation2 + $0xd8] sm:$0xff] 0.0
          %271 = vst [vmem:[#allocation2 + $0xe0] sm:$0xff] 0.0
          %272 = vst [vmem:[#allocation2 + $0xe8] sm:$0xff] 0.0
          %273 = vst [vmem:[#allocation2 + $0xf0] sm:$0xff] 0.0
          %274 = vst [vmem:[#allocation2 + $0xf8] sm:$0xff] 0.0
          %275 = vst [vmem:[#allocation2 + $0x100] sm:$0xff] 0.0
          %276 = vst [vmem:[#allocation2 + $0x108] sm:$0xff] 0.0
          %277 = vst [vmem:[#allocation2 + $0x110] sm:$0xff] 0.0
          %278 = vst [vmem:[#allocation2 + $0x118] sm:$0xff] 0.0
          %279 = vst [vmem:[#allocation2 + $0x120] sm:$0xff] 0.0
          %280 = vst [vmem:[#allocation2 + $0x128] sm:$0xff] 0.0
          %281 = vst [vmem:[#allocation2 + $0x130] sm:$0xff] 0.0
          %282 = vst [vmem:[#allocation2 + $0x138] sm:$0xff] 0.0
          %283 = vst [vmem:[#allocation2 + $0x140] sm:$0xff] 0.0
          %284 = vst [vmem:[#allocation2 + $0x148] sm:$0xff] 0.0
          %285 = vst [vmem:[#allocation2 + $0x150] sm:$0xff] 0.0
          %286 = vst [vmem:[#allocation2 + $0x158] sm:$0xff] 0.0
          %287 = vst [vmem:[#allocation2 + $0x160] sm:$0xff] 0.0
          %288 = vst [vmem:[#allocation2 + $0x168] sm:$0xff] 0.0
          %289 = vst [vmem:[#allocation2 + $0x170] sm:$0xff] 0.0
          %290 = vst [vmem:[#allocation2 + $0x178] sm:$0xff] 0.0
          %291 = vst [vmem:[#allocation2 + $0x180] sm:$0xff] 0.0
          %292 = vst [vmem:[#allocation2 + $0x188] sm:$0xff] 0.0
          %293 = vst [vmem:[#allocation2 + $0x190] sm:$0xff] 0.0
          %294 = vst [vmem:[#allocation2 + $0x198] sm:$0xff] 0.0
          %295 = vst [vmem:[#allocation2 + $0x1a0] sm:$0xff] 0.0
          %296 = vst [vmem:[#allocation2 + $0x1a8] sm:$0xff] 0.0
          %297 = vst [vmem:[#allocation2 + $0x1b0] sm:$0xff] 0.0
          %298 = vst [vmem:[#allocation2 + $0x1b8] sm:$0xff] 0.0
          %299 = vst [vmem:[#allocation2 + $0x1c0] sm:$0xff] 0.0
          %300 = vst [vmem:[#allocation2 + $0x1c8] sm:$0xff] 0.0
          %301 = vst [vmem:[#allocation2 + $0x1d0] sm:$0xff] 0.0
          %302 = vst [vmem:[#allocation2 + $0x1d8] sm:$0xff] 0.0
          %303 = vst [vmem:[#allocation2 + $0x1e0] sm:$0xff] 0.0
          %304 = vst [vmem:[#allocation2 + $0x1e8] sm:$0xff] 0.0
          %305 = vst [vmem:[#allocation2 + $0x1f0] sm:$0xff] 0.0
          %306 = vst [vmem:[#allocation2 + $0x1f8] sm:$0xff] 0.0
          %307 = vst [vmem:[#allocation2 + $0x200] sm:$0xff] 0.0
          %308 = vst [vmem:[#allocation2 + $0x208] sm:$0xff] 0.0
          %309 = vst [vmem:[#allocation2 + $0x210] sm:$0xff] 0.0
          %310 = vst [vmem:[#allocation2 + $0x218] sm:$0xff] 0.0
          %311 = vst [vmem:[#allocation2 + $0x220] sm:$0xff] 0.0
          %312 = vst [vmem:[#allocation2 + $0x228] sm:$0xff] 0.0
          %313 = vst [vmem:[#allocation2 + $0x230] sm:$0xff] 0.0
          %314 = vst [vmem:[#allocation2 + $0x238] sm:$0xff] 0.0
          %315 = vst [vmem:[#allocation2 + $0x240] sm:$0xff] 0.0
          %316 = vst [vmem:[#allocation2 + $0x248] sm:$0xff] 0.0
          %317 = vst [vmem:[#allocation2 + $0x250] sm:$0xff] 0.0
          %318 = vst [vmem:[#allocation2 + $0x258] sm:$0xff] 0.0
          %319 = vst [vmem:[#allocation2 + $0x260] sm:$0xff] 0.0
          %320 = vst [vmem:[#allocation2 + $0x268] sm:$0xff] 0.0
          %321 = vst [vmem:[#allocation2 + $0x270] sm:$0xff] 0.0
          %322 = vst [vmem:[#allocation2 + $0x278] sm:$0xff] 0.0
          %323 = vst [vmem:[#allocation2 + $0x280] sm:$0xff] 0.0
          %324 = vst [vmem:[#allocation2 + $0x288] sm:$0xff] 0.0
          %325 = vst [vmem:[#allocation2 + $0x290] sm:$0xff] 0.0
          %326 = vst [vmem:[#allocation2 + $0x298] sm:$0xff] 0.0
          %327 = vst [vmem:[#allocation2 + $0x2a0] sm:$0xff] 0.0
          %328 = vst [vmem:[#allocation2 + $0x2a8] sm:$0xff] 0.0
          %329 = vst [vmem:[#allocation2 + $0x2b0] sm:$0xff] 0.0
          %330 = vst [vmem:[#allocation2 + $0x2b8] sm:$0xff] 0.0
          %331 = vst [vmem:[#allocation2 + $0x2c0] sm:$0xff] 0.0
          %332 = vst [vmem:[#allocation2 + $0x2c8] sm:$0xff] 0.0
          %333 = vst [vmem:[#allocation2 + $0x2d0] sm:$0xff] 0.0
          %334 = vst [vmem:[#allocation2 + $0x2d8] sm:$0xff] 0.0
          %335 = vst [vmem:[#allocation2 + $0x2e0] sm:$0xff] 0.0
          %336 = vst [vmem:[#allocation2 + $0x2e8] sm:$0xff] 0.0
          %337 = vst [vmem:[#allocation2 + $0x2f0] sm:$0xff] 0.0
          %338 = vst [vmem:[#allocation2 + $0x2f8] sm:$0xff] 0.0
          %339 = vst [vmem:[#allocation2 + $0x300] sm:$0xff] 0.0
          %340 = vst [vmem:[#allocation2 + $0x308] sm:$0xff] 0.0
          %341 = vst [vmem:[#allocation2 + $0x310] sm:$0xff] 0.0
          %342 = vst [vmem:[#allocation2 + $0x318] sm:$0xff] 0.0
          %343 = vst [vmem:[#allocation2 + $0x320] sm:$0xff] 0.0
          %344 = vst [vmem:[#allocation2 + $0x328] sm:$0xff] 0.0
          %345 = vst [vmem:[#allocation2 + $0x330] sm:$0xff] 0.0
          %346 = vst [vmem:[#allocation2 + $0x338] sm:$0xff] 0.0
          %347 = vst [vmem:[#allocation2 + $0x340] sm:$0xff] 0.0
          %348 = vst [vmem:[#allocation2 + $0x348] sm:$0xff] 0.0
          %349 = vst [vmem:[#allocation2 + $0x350] sm:$0xff] 0.0
          %350 = vst [vmem:[#allocation2 + $0x358] sm:$0xff] 0.0
          %351 = vst [vmem:[#allocation2 + $0x360] sm:$0xff] 0.0
          %352 = vst [vmem:[#allocation2 + $0x368] sm:$0xff] 0.0
          %353 = vst [vmem:[#allocation2 + $0x370] sm:$0xff] 0.0
          %354 = vst [vmem:[#allocation2 + $0x378] sm:$0xff] 0.0
          %355 = vst [vmem:[#allocation2 + $0x380] sm:$0xff] 0.0
          %356 = vst [vmem:[#allocation2 + $0x388] sm:$0xff] 0.0
          %357 = vst [vmem:[#allocation2 + $0x390] sm:$0xff] 0.0
          %358 = vst [vmem:[#allocation2 + $0x398] sm:$0xff] 0.0
          %359 = vst [vmem:[#allocation2 + $0x3a0] sm:$0xff] 0.0
          %360 = vst [vmem:[#allocation2 + $0x3a8] sm:$0xff] 0.0
          %361 = vst [vmem:[#allocation2 + $0x3b0] sm:$0xff] 0.0
          %362 = vst [vmem:[#allocation2 + $0x3b8] sm:$0xff] 0.0
          %363 = vst [vmem:[#allocation2 + $0x3c0] sm:$0xff] 0.0
          %364 = vst [vmem:[#allocation2 + $0x3c8] sm:$0xff] 0.0
          %365 = vst [vmem:[#allocation2 + $0x3d0] sm:$0xff] 0.0
          %366 = vst [vmem:[#allocation2 + $0x3d8] sm:$0xff] 0.0
          %367 = vst [vmem:[#allocation2 + $0x3e0] sm:$0xff] 0.0
          %368 = vst [vmem:[#allocation2 + $0x3e8] sm:$0xff] 0.0
          %369 = vst [vmem:[#allocation2 + $0x3f0] sm:$0xff] 0.0
          %370 = vst [vmem:[#allocation2 + $0x3f8] sm:$0xff] 0.0
        $region40: #{tpu_custom_call.1} parent=27 // pred_fallthru
          _
        %v371 = vld [vmem:[#allocation2] sm:$0xff]
        %v372 = vld [vmem:[#allocation2 + $0x8] sm:$0xff]
        %v373 = vld [vmem:[#allocation2 + $0x10] sm:$0xff]
        %v374 = vld [vmem:[#allocation2 + $0x18] sm:$0xff]
        %v375 = vld [vmem:[#allocation2 + $0x20] sm:$0xff]
        %v376 = vld [vmem:[#allocation2 + $0x28] sm:$0xff]
        %v377 = vld [vmem:[#allocation2 + $0x30] sm:$0xff]
        %v378 = vld [vmem:[#allocation2 + $0x38] sm:$0xff]
        %v379 = vld [vmem:[#allocation2 + $0x40] sm:$0xff]
        %v380 = vld [vmem:[#allocation2 + $0x48] sm:$0xff]
        %v381 = vld [vmem:[#allocation2 + $0x50] sm:$0xff]
        %v382 = vld [vmem:[#allocation2 + $0x58] sm:$0xff]
        %v383 = vld [vmem:[#allocation2 + $0x60] sm:$0xff]
        %v384 = vld [vmem:[#allocation2 + $0x68] sm:$0xff]
        %v385 = vld [vmem:[#allocation2 + $0x70] sm:$0xff]
        %v386 = vld [vmem:[#allocation2 + $0x78] sm:$0xff]
        %v387 = vld [vmem:[#allocation2 + $0x80] sm:$0xff]
        %v388 = vld [vmem:[#allocation2 + $0x88] sm:$0xff]
        %v389 = vld [vmem:[#allocation2 + $0x90] sm:$0xff]
        %v390 = vld [vmem:[#allocation2 + $0x98] sm:$0xff]
        %v391 = vld [vmem:[#allocation2 + $0xa0] sm:$0xff]
        %v392 = vld [vmem:[#allocation2 + $0xa8] sm:$0xff]
        %v393 = vld [vmem:[#allocation2 + $0xb0] sm:$0xff]
        %v394 = vld [vmem:[#allocation2 + $0xb8] sm:$0xff]
        %v395 = vld [vmem:[#allocation2 + $0xc0] sm:$0xff]
        %v396 = vld [vmem:[#allocation2 + $0xc8] sm:$0xff]
        %v397 = vld [vmem:[#allocation2 + $0xd0] sm:$0xff]
        %v398 = vld [vmem:[#allocation2 + $0xd8] sm:$0xff]
        %v399 = vld [vmem:[#allocation2 + $0xe0] sm:$0xff]
        %v400 = vld [vmem:[#allocation2 + $0xe8] sm:$0xff]
        %v401 = vld [vmem:[#allocation2 + $0xf0] sm:$0xff]
        %v402 = vld [vmem:[#allocation2 + $0xf8] sm:$0xff]
        %v403 = vld [vmem:[#allocation2 + $0x100] sm:$0xff]
        %v404 = vld [vmem:[#allocation2 + $0x108] sm:$0xff]
        %v405 = vld [vmem:[#allocation2 + $0x110] sm:$0xff]
        %v406 = vld [vmem:[#allocation2 + $0x118] sm:$0xff]
        %v407 = vld [vmem:[#allocation2 + $0x120] sm:$0xff]
        %v408 = vld [vmem:[#allocation2 + $0x128] sm:$0xff]
        %v409 = vld [vmem:[#allocation2 + $0x130] sm:$0xff]
        %v410 = vld [vmem:[#allocation2 + $0x138] sm:$0xff]
        %v411 = vld [vmem:[#allocation2 + $0x140] sm:$0xff]
        %v412 = vld [vmem:[#allocation2 + $0x148] sm:$0xff]
        %v413 = vld [vmem:[#allocation2 + $0x150] sm:$0xff]
        %v414 = vld [vmem:[#allocation2 + $0x158] sm:$0xff]
        %v415 = vld [vmem:[#allocation2 + $0x160] sm:$0xff]
        %v416 = vld [vmem:[#allocation2 + $0x168] sm:$0xff]
        %v417 = vld [vmem:[#allocation2 + $0x170] sm:$0xff]
        %v418 = vld [vmem:[#allocation2 + $0x178] sm:$0xff]
        %v419 = vld [vmem:[#allocation2 + $0x180] sm:$0xff]
        %v420 = vld [vmem:[#allocation2 + $0x188] sm:$0xff]
        %v421 = vld [vmem:[#allocation2 + $0x190] sm:$0xff]
        %v422 = vld [vmem:[#allocation2 + $0x198] sm:$0xff]
        %v423 = vld [vmem:[#allocation2 + $0x1a0] sm:$0xff]
        %v424 = vld [vmem:[#allocation2 + $0x1a8] sm:$0xff]
        %v425 = vld [vmem:[#allocation2 + $0x1b0] sm:$0xff]
        %v426 = vld [vmem:[#allocation2 + $0x1b8] sm:$0xff]
        %v427 = vld [vmem:[#allocation2 + $0x1c0] sm:$0xff]
        %v428 = vld [vmem:[#allocation2 + $0x1c8] sm:$0xff]
        %v429 = vld [vmem:[#allocation2 + $0x1d0] sm:$0xff]
        %v430 = vld [vmem:[#allocation2 + $0x1d8] sm:$0xff]
        %v431 = vld [vmem:[#allocation2 + $0x1e0] sm:$0xff]
        %v432 = vld [vmem:[#allocation2 + $0x1e8] sm:$0xff]
        %v433 = vld [vmem:[#allocation2 + $0x1f0] sm:$0xff]
        %v434 = vld [vmem:[#allocation2 + $0x1f8] sm:$0xff]
        %v435 = vld [vmem:[#allocation2 + $0x200] sm:$0xff]
        %v436 = vld [vmem:[#allocation2 + $0x208] sm:$0xff]
        %v437 = vld [vmem:[#allocation2 + $0x210] sm:$0xff]
        %v438 = vld [vmem:[#allocation2 + $0x218] sm:$0xff]
        %v439 = vld [vmem:[#allocation2 + $0x220] sm:$0xff]
        %v440 = vld [vmem:[#allocation2 + $0x228] sm:$0xff]
        %v441 = vld [vmem:[#allocation2 + $0x230] sm:$0xff]
        %v442 = vld [vmem:[#allocation2 + $0x238] sm:$0xff]
        %v443 = vld [vmem:[#allocation2 + $0x240] sm:$0xff]
        %v444 = vld [vmem:[#allocation2 + $0x248] sm:$0xff]
        %v445 = vld [vmem:[#allocation2 + $0x250] sm:$0xff]
        %v446 = vld [vmem:[#allocation2 + $0x258] sm:$0xff]
        %v447 = vld [vmem:[#allocation2 + $0x260] sm:$0xff]
        %v448 = vld [vmem:[#allocation2 + $0x268] sm:$0xff]
        %v449 = vld [vmem:[#allocation2 + $0x270] sm:$0xff]
        %v450 = vld [vmem:[#allocation2 + $0x278] sm:$0xff]
        %v451 = vld [vmem:[#allocation2 + $0x280] sm:$0xff]
        %v452 = vld [vmem:[#allocation2 + $0x288] sm:$0xff]
        %v453 = vld [vmem:[#allocation2 + $0x290] sm:$0xff]
        %v454 = vld [vmem:[#allocation2 + $0x298] sm:$0xff]
        %v455 = vld [vmem:[#allocation2 + $0x2a0] sm:$0xff]
        %v456 = vld [vmem:[#allocation2 + $0x2a8] sm:$0xff]
        %v457 = vld [vmem:[#allocation2 + $0x2b0] sm:$0xff]
        %v458 = vld [vmem:[#allocation2 + $0x2b8] sm:$0xff]
        %v459 = vld [vmem:[#allocation2 + $0x2c0] sm:$0xff]
        %v460 = vld [vmem:[#allocation2 + $0x2c8] sm:$0xff]
        %v461 = vld [vmem:[#allocation2 + $0x2d0] sm:$0xff]
        %v462 = vld [vmem:[#allocation2 + $0x2d8] sm:$0xff]
        %v463 = vld [vmem:[#allocation2 + $0x2e0] sm:$0xff]
        %v464 = vld [vmem:[#allocation2 + $0x2e8] sm:$0xff]
        %v465 = vld [vmem:[#allocation2 + $0x2f0] sm:$0xff]
        %v466 = vld [vmem:[#allocation2 + $0x2f8] sm:$0xff]
        %v467 = vld [vmem:[#allocation2 + $0x300] sm:$0xff]
        %v468 = vld [vmem:[#allocation2 + $0x308] sm:$0xff]
        %v469 = vld [vmem:[#allocation2 + $0x310] sm:$0xff]
        %v470 = vld [vmem:[#allocation2 + $0x318] sm:$0xff]
        %v471 = vld [vmem:[#allocation2 + $0x320] sm:$0xff]
        %v472 = vld [vmem:[#allocation2 + $0x328] sm:$0xff]
        %v473 = vld [vmem:[#allocation2 + $0x330] sm:$0xff]
        %v474 = vld [vmem:[#allocation2 + $0x338] sm:$0xff]
        %v475 = vld [vmem:[#allocation2 + $0x340] sm:$0xff]
        %v476 = vld [vmem:[#allocation2 + $0x348] sm:$0xff]
        %v477 = vld [vmem:[#allocation2 + $0x350] sm:$0xff]
        %v478 = vld [vmem:[#allocation2 + $0x358] sm:$0xff]
        %v479 = vld [vmem:[#allocation2 + $0x360] sm:$0xff]
        %v480 = vld [vmem:[#allocation2 + $0x368] sm:$0xff]
        %v481 = vld [vmem:[#allocation2 + $0x370] sm:$0xff]
        %v482 = vld [vmem:[#allocation2 + $0x378] sm:$0xff]
        %v483 = vld [vmem:[#allocation2 + $0x380] sm:$0xff]
        %v484 = vld [vmem:[#allocation2 + $0x388] sm:$0xff]
        %v485 = vld [vmem:[#allocation2 + $0x390] sm:$0xff]
        %v486 = vld [vmem:[#allocation2 + $0x398] sm:$0xff]
        %v487 = vld [vmem:[#allocation2 + $0x3a0] sm:$0xff]
        %v488 = vld [vmem:[#allocation2 + $0x3a8] sm:$0xff]
        %v489 = vld [vmem:[#allocation2 + $0x3b0] sm:$0xff]
        %v490 = vld [vmem:[#allocation2 + $0x3b8] sm:$0xff]
        %v491 = vld [vmem:[#allocation2 + $0x3c0] sm:$0xff]
        %v492 = vld [vmem:[#allocation2 + $0x3c8] sm:$0xff]
        %v493 = vld [vmem:[#allocation2 + $0x3d0] sm:$0xff]
        %v494 = vld [vmem:[#allocation2 + $0x3d8] sm:$0xff]
        %v495 = vld [vmem:[#allocation2 + $0x3e0] sm:$0xff]
        %v496 = vld [vmem:[#allocation2 + $0x3e8] sm:$0xff]
        %v497 = vld [vmem:[#allocation2 + $0x3f0] sm:$0xff]
        %v498 = vld [vmem:[#allocation2 + $0x3f8] sm:$0xff]
        %v499 = vld [vmem:[%s198] sm:$0xff]
        %v500 = vld [vmem:[%s198 + $0x8] sm:$0xff]
        %v501 = vld [vmem:[%s198 + $0x10] sm:$0xff]
        %v502 = vld [vmem:[%s198 + $0x18] sm:$0xff]
        %v503 = vld [vmem:[%s198 + $0x20] sm:$0xff]
        %v504 = vld [vmem:[%s198 + $0x28] sm:$0xff]
        %v505 = vld [vmem:[%s198 + $0x30] sm:$0xff]
        %v506 = vld [vmem:[%s198 + $0x38] sm:$0xff]
        %v507 = vld [vmem:[%s198 + $0x40] sm:$0xff]
        %v508 = vld [vmem:[%s198 + $0x48] sm:$0xff]
        %v509 = vld [vmem:[%s198 + $0x50] sm:$0xff]
        %v510 = vld [vmem:[%s198 + $0x58] sm:$0xff]
        %v511 = vld [vmem:[%s198 + $0x60] sm:$0xff]
        %v512 = vld [vmem:[%s198 + $0x68] sm:$0xff]
        %v513 = vld [vmem:[%s198 + $0x70] sm:$0xff]
        %v514 = vld [vmem:[%s198 + $0x78] sm:$0xff]
        %v515 = vld [vmem:[%s198 + $0x80] sm:$0xff]
        %v516 = vld [vmem:[%s198 + $0x88] sm:$0xff]
        %v517 = vld [vmem:[%s198 + $0x90] sm:$0xff]
        %v518 = vld [vmem:[%s198 + $0x98] sm:$0xff]
        %v519 = vld [vmem:[%s198 + $0xa0] sm:$0xff]
        %v520 = vld [vmem:[%s198 + $0xa8] sm:$0xff]
        %v521 = vld [vmem:[%s198 + $0xb0] sm:$0xff]
        %v522 = vld [vmem:[%s198 + $0xb8] sm:$0xff]
        %v523 = vld [vmem:[%s198 + $0xc0] sm:$0xff]
        %v524 = vld [vmem:[%s198 + $0xc8] sm:$0xff]
        %v525 = vld [vmem:[%s198 + $0xd0] sm:$0xff]
        %v526 = vld [vmem:[%s198 + $0xd8] sm:$0xff]
        %v527 = vld [vmem:[%s198 + $0xe0] sm:$0xff]
        %v528 = vld [vmem:[%s198 + $0xe8] sm:$0xff]
        %v529 = vld [vmem:[%s198 + $0xf0] sm:$0xff]
        %v530 = vld [vmem:[%s198 + $0xf8] sm:$0xff]
        %v531 = vld [vmem:[%s198 + $0x100] sm:$0xff]
        %v532 = vld [vmem:[%s198 + $0x108] sm:$0xff]
        %v533 = vld [vmem:[%s198 + $0x110] sm:$0xff]
        %v534 = vld [vmem:[%s198 + $0x118] sm:$0xff]
        %v535 = vld [vmem:[%s198 + $0x120] sm:$0xff]
        %v536 = vld [vmem:[%s198 + $0x128] sm:$0xff]
        %v537 = vld [vmem:[%s198 + $0x130] sm:$0xff]
        %v538 = vld [vmem:[%s198 + $0x138] sm:$0xff]
        %v539 = vld [vmem:[%s198 + $0x140] sm:$0xff]
        %v540 = vld [vmem:[%s198 + $0x148] sm:$0xff]
        %v541 = vld [vmem:[%s198 + $0x150] sm:$0xff]
        %v542 = vld [vmem:[%s198 + $0x158] sm:$0xff]
        %v543 = vld [vmem:[%s198 + $0x160] sm:$0xff]
        %v544 = vld [vmem:[%s198 + $0x168] sm:$0xff]
        %v545 = vld [vmem:[%s198 + $0x170] sm:$0xff]
        %v546 = vld [vmem:[%s198 + $0x178] sm:$0xff]
        %v547 = vld [vmem:[%s198 + $0x180] sm:$0xff]
        %v548 = vld [vmem:[%s198 + $0x188] sm:$0xff]
        %v549 = vld [vmem:[%s198 + $0x190] sm:$0xff]
        %v550 = vld [vmem:[%s198 + $0x198] sm:$0xff]
        %v551 = vld [vmem:[%s198 + $0x1a0] sm:$0xff]
        %v552 = vld [vmem:[%s198 + $0x1a8] sm:$0xff]
        %v553 = vld [vmem:[%s198 + $0x1b0] sm:$0xff]
        %v554 = vld [vmem:[%s198 + $0x1b8] sm:$0xff]
        %v555 = vld [vmem:[%s198 + $0x1c0] sm:$0xff]
        %v556 = vld [vmem:[%s198 + $0x1c8] sm:$0xff]
        %v557 = vld [vmem:[%s198 + $0x1d0] sm:$0xff]
        %v558 = vld [vmem:[%s198 + $0x1d8] sm:$0xff]
        %v559 = vld [vmem:[%s198 + $0x1e0] sm:$0xff]
        %v560 = vld [vmem:[%s198 + $0x1e8] sm:$0xff]
        %v561 = vld [vmem:[%s198 + $0x1f0] sm:$0xff]
        %v562 = vld [vmem:[%s198 + $0x1f8] sm:$0xff]
        %v563 = vld [vmem:[%s207] sm:$0xff]
        %v564 = vld [vmem:[%s207 + $0x8] sm:$0xff]
        %v565 = vld [vmem:[%s207 + $0x10] sm:$0xff]
        %v566 = vld [vmem:[%s207 + $0x18] sm:$0xff]
        %v567 = vld [vmem:[%s207 + $0x20] sm:$0xff]
        %v568 = vld [vmem:[%s207 + $0x28] sm:$0xff]
        %v569 = vld [vmem:[%s207 + $0x30] sm:$0xff]
        %v570 = vld [vmem:[%s207 + $0x38] sm:$0xff]
        %v571 = vld [vmem:[%s207 + $0x40] sm:$0xff]
        %v572 = vld [vmem:[%s207 + $0x48] sm:$0xff]
        %v573 = vld [vmem:[%s207 + $0x50] sm:$0xff]
        %v574 = vld [vmem:[%s207 + $0x58] sm:$0xff]
        %v575 = vld [vmem:[%s207 + $0x60] sm:$0xff]
        %v576 = vld [vmem:[%s207 + $0x68] sm:$0xff]
        %v577 = vld [vmem:[%s207 + $0x70] sm:$0xff]
        %v578 = vld [vmem:[%s207 + $0x78] sm:$0xff]
        %v579 = vld [vmem:[%s207 + $0x80] sm:$0xff]
        %v580 = vld [vmem:[%s207 + $0x88] sm:$0xff]
        %v581 = vld [vmem:[%s207 + $0x90] sm:$0xff]
        %v582 = vld [vmem:[%s207 + $0x98] sm:$0xff]
        %v583 = vld [vmem:[%s207 + $0xa0] sm:$0xff]
        %v584 = vld [vmem:[%s207 + $0xa8] sm:$0xff]
        %v585 = vld [vmem:[%s207 + $0xb0] sm:$0xff]
        %v586 = vld [vmem:[%s207 + $0xb8] sm:$0xff]
        %v587 = vld [vmem:[%s207 + $0xc0] sm:$0xff]
        %v588 = vld [vmem:[%s207 + $0xc8] sm:$0xff]
        %v589 = vld [vmem:[%s207 + $0xd0] sm:$0xff]
        %v590 = vld [vmem:[%s207 + $0xd8] sm:$0xff]
        %v591 = vld [vmem:[%s207 + $0xe0] sm:$0xff]
        %v592 = vld [vmem:[%s207 + $0xe8] sm:$0xff]
        %v593 = vld [vmem:[%s207 + $0xf0] sm:$0xff]
        %v594 = vld [vmem:[%s207 + $0xf8] sm:$0xff]
        %v595 = vld [vmem:[%s207 + $0x100] sm:$0xff]
        %v596 = vld [vmem:[%s207 + $0x108] sm:$0xff]
        %v597 = vld [vmem:[%s207 + $0x110] sm:$0xff]
        %v598 = vld [vmem:[%s207 + $0x118] sm:$0xff]
        %v599 = vld [vmem:[%s207 + $0x120] sm:$0xff]
        %v600 = vld [vmem:[%s207 + $0x128] sm:$0xff]
        %v601 = vld [vmem:[%s207 + $0x130] sm:$0xff]
        %v602 = vld [vmem:[%s207 + $0x138] sm:$0xff]
        %v603 = vld [vmem:[%s207 + $0x140] sm:$0xff]
        %v604 = vld [vmem:[%s207 + $0x148] sm:$0xff]
        %v605 = vld [vmem:[%s207 + $0x150] sm:$0xff]
        %v606 = vld [vmem:[%s207 + $0x158] sm:$0xff]
        %v607 = vld [vmem:[%s207 + $0x160] sm:$0xff]
        %v608 = vld [vmem:[%s207 + $0x168] sm:$0xff]
        %v609 = vld [vmem:[%s207 + $0x170] sm:$0xff]
        %v610 = vld [vmem:[%s207 + $0x178] sm:$0xff]
        %v611 = vld [vmem:[%s207 + $0x180] sm:$0xff]
        %v612 = vld [vmem:[%s207 + $0x188] sm:$0xff]
        %v613 = vld [vmem:[%s207 + $0x190] sm:$0xff]
        %v614 = vld [vmem:[%s207 + $0x198] sm:$0xff]
        %v615 = vld [vmem:[%s207 + $0x1a0] sm:$0xff]
        %v616 = vld [vmem:[%s207 + $0x1a8] sm:$0xff]
        %v617 = vld [vmem:[%s207 + $0x1b0] sm:$0xff]
        %v618 = vld [vmem:[%s207 + $0x1b8] sm:$0xff]
        %v619 = vld [vmem:[%s207 + $0x1c0] sm:$0xff]
        %v620 = vld [vmem:[%s207 + $0x1c8] sm:$0xff]
        %v621 = vld [vmem:[%s207 + $0x1d0] sm:$0xff]
        %v622 = vld [vmem:[%s207 + $0x1d8] sm:$0xff]
        %v623 = vld [vmem:[%s207 + $0x1e0] sm:$0xff]
        %v624 = vld [vmem:[%s207 + $0x1e8] sm:$0xff]
        %v625 = vld [vmem:[%s207 + $0x1f0] sm:$0xff]
        %v626 = vld [vmem:[%s207 + $0x1f8] sm:$0xff]
        %v627 = vld [vmem:[%s207 + $0x200] sm:$0xff]
        %v628 = vld [vmem:[%s207 + $0x208] sm:$0xff]
        %v629 = vld [vmem:[%s207 + $0x210] sm:$0xff]
        %v630 = vld [vmem:[%s207 + $0x218] sm:$0xff]
        %v631 = vld [vmem:[%s207 + $0x220] sm:$0xff]
        %v632 = vld [vmem:[%s207 + $0x228] sm:$0xff]
        %v633 = vld [vmem:[%s207 + $0x230] sm:$0xff]
        %v634 = vld [vmem:[%s207 + $0x238] sm:$0xff]
        %v635 = vld [vmem:[%s207 + $0x240] sm:$0xff]
        %v636 = vld [vmem:[%s207 + $0x248] sm:$0xff]
        %v637 = vld [vmem:[%s207 + $0x250] sm:$0xff]
        %v638 = vld [vmem:[%s207 + $0x258] sm:$0xff]
        %v639 = vld [vmem:[%s207 + $0x260] sm:$0xff]
        %v640 = vld [vmem:[%s207 + $0x268] sm:$0xff]
        %v641 = vld [vmem:[%s207 + $0x270] sm:$0xff]
        %v642 = vld [vmem:[%s207 + $0x278] sm:$0xff]
        %v643 = vld [vmem:[%s207 + $0x280] sm:$0xff]
        %v644 = vld [vmem:[%s207 + $0x288] sm:$0xff]
        %v645 = vld [vmem:[%s207 + $0x290] sm:$0xff]
        %v646 = vld [vmem:[%s207 + $0x298] sm:$0xff]
        %v647 = vld [vmem:[%s207 + $0x2a0] sm:$0xff]
        %v648 = vld [vmem:[%s207 + $0x2a8] sm:$0xff]
        %v649 = vld [vmem:[%s207 + $0x2b0] sm:$0xff]
        %v650 = vld [vmem:[%s207 + $0x2b8] sm:$0xff]
        %v651 = vld [vmem:[%s207 + $0x2c0] sm:$0xff]
        %v652 = vld [vmem:[%s207 + $0x2c8] sm:$0xff]
        %v653 = vld [vmem:[%s207 + $0x2d0] sm:$0xff]
        %v654 = vld [vmem:[%s207 + $0x2d8] sm:$0xff]
        %v655 = vld [vmem:[%s207 + $0x2e0] sm:$0xff]
        %v656 = vld [vmem:[%s207 + $0x2e8] sm:$0xff]
        %v657 = vld [vmem:[%s207 + $0x2f0] sm:$0xff]
        %v658 = vld [vmem:[%s207 + $0x2f8] sm:$0xff]
        %v659 = vld [vmem:[%s207 + $0x300] sm:$0xff]
        %v660 = vld [vmem:[%s207 + $0x308] sm:$0xff]
        %v661 = vld [vmem:[%s207 + $0x310] sm:$0xff]
        %v662 = vld [vmem:[%s207 + $0x318] sm:$0xff]
        %v663 = vld [vmem:[%s207 + $0x320] sm:$0xff]
        %v664 = vld [vmem:[%s207 + $0x328] sm:$0xff]
        %v665 = vld [vmem:[%s207 + $0x330] sm:$0xff]
        %v666 = vld [vmem:[%s207 + $0x338] sm:$0xff]
        %v667 = vld [vmem:[%s207 + $0x340] sm:$0xff]
        %v668 = vld [vmem:[%s207 + $0x348] sm:$0xff]
        %v669 = vld [vmem:[%s207 + $0x350] sm:$0xff]
        %v670 = vld [vmem:[%s207 + $0x358] sm:$0xff]
        %v671 = vld [vmem:[%s207 + $0x360] sm:$0xff]
        %v672 = vld [vmem:[%s207 + $0x368] sm:$0xff]
        %v673 = vld [vmem:[%s207 + $0x370] sm:$0xff]
        %v674 = vld [vmem:[%s207 + $0x378] sm:$0xff]
        %v675 = vld [vmem:[%s207 + $0x380] sm:$0xff]
        %v676 = vld [vmem:[%s207 + $0x388] sm:$0xff]
        %v677 = vld [vmem:[%s207 + $0x390] sm:$0xff]
        %v678 = vld [vmem:[%s207 + $0x398] sm:$0xff]
        %v679 = vld [vmem:[%s207 + $0x3a0] sm:$0xff]
        %v680 = vld [vmem:[%s207 + $0x3a8] sm:$0xff]
        %v681 = vld [vmem:[%s207 + $0x3b0] sm:$0xff]
        %v682 = vld [vmem:[%s207 + $0x3b8] sm:$0xff]
        %v683 = vld [vmem:[%s207 + $0x3c0] sm:$0xff]
        %v684 = vld [vmem:[%s207 + $0x3c8] sm:$0xff]
        %v685 = vld [vmem:[%s207 + $0x3d0] sm:$0xff]
        %v686 = vld [vmem:[%s207 + $0x3d8] sm:$0xff]
        %v687 = vld [vmem:[%s207 + $0x3e0] sm:$0xff]
        %v688 = vld [vmem:[%s207 + $0x3e8] sm:$0xff]
        %v689 = vld [vmem:[%s207 + $0x3f0] sm:$0xff]
        %v690 = vld [vmem:[%s207 + $0x3f8] sm:$0xff]
        %691 = vmatprep.subr.mxu0 %v564
        %692 = vmatpush1.msra.mxu0 %v563
        %693 = vmatprep.subr.mxu0 %v568
        %694 = vmatpush1.msra.mxu0 %v567
        %695 = vmatprep.subr.mxu0 %v572
        %696 = vmatpush1.msra.mxu0 %v571
        %697 = vmatprep.subr.mxu0 %v576
        %698 = vmatpush1.msra.mxu0 %v575
        %699 = vmatprep.subr.mxu0 %v580
        %700 = vmatpush1.msra.mxu0 %v579
        %701 = vmatprep.subr.mxu0 %v584
        %702 = vmatpush1.msra.mxu0 %v583
        %703 = vmatprep.subr.mxu0 %v588
        %704 = vmatpush1.msra.mxu0 %v587
        %705 = vmatprep.subr.mxu0 %v592
        %706 = vmatpush1.msra.mxu0 %v591
        %707 = vmatprep.subr.mxu0 %v596
        %708 = vmatpush1.msra.mxu0 %v595
        %709 = vmatprep.subr.mxu0 %v600
        %710 = vmatpush1.msra.mxu0 %v599
        %711 = vmatprep.subr.mxu0 %v604
        %712 = vmatpush1.msra.mxu0 %v603
        %713 = vmatprep.subr.mxu0 %v608
        %714 = vmatpush1.msra.mxu0 %v607
        %715 = vmatprep.subr.mxu0 %v612
        %716 = vmatpush1.msra.mxu0 %v611
        %717 = vmatprep.subr.mxu0 %v616
        %718 = vmatpush1.msra.mxu0 %v615
        %719 = vmatprep.subr.mxu0 %v620
        %720 = vmatpush1.msra.mxu0 %v619
        %721 = vmatprep.subr.mxu0 %v624
        %722 = vmatpush1.msra.mxu0 %v623
        %723 = vmatprep.subr.mxu0 %v628
        %724 = vmatpush1.msra.mxu0 %v627
        %725 = vmatprep.subr.mxu0 %v632
        %726 = vmatpush1.msra.mxu0 %v631
        %727 = vmatprep.subr.mxu0 %v636
        %728 = vmatpush1.msra.mxu0 %v635
        %729 = vmatprep.subr.mxu0 %v640
        %730 = vmatpush1.msra.mxu0 %v639
        %731 = vmatprep.subr.mxu0 %v644
        %732 = vmatpush1.msra.mxu0 %v643
        %733 = vmatprep.subr.mxu0 %v648
        %734 = vmatpush1.msra.mxu0 %v647
        %735 = vmatprep.subr.mxu0 %v652
        %736 = vmatpush1.msra.mxu0 %v651
        %737 = vmatprep.subr.mxu0 %v656
        %738 = vmatpush1.msra.mxu0 %v655
        %739 = vmatprep.subr.mxu0 %v660
        %740 = vmatpush1.msra.mxu0 %v659
        %741 = vmatprep.subr.mxu0 %v664
        %742 = vmatpush1.msra.mxu0 %v663
        %743 = vmatprep.subr.mxu0 %v668
        %744 = vmatpush1.msra.mxu0 %v667
        %745 = vmatprep.subr.mxu0 %v672
        %746 = vmatpush1.msra.mxu0 %v671
        %747 = vmatprep.subr.mxu0 %v676
        %748 = vmatpush1.msra.mxu0 %v675
        %749 = vmatprep.subr.mxu0 %v680
        %750 = vmatpush1.msra.mxu0 %v679
        %751 = vmatprep.subr.mxu0 %v684
        %752 = vmatpush1.msra.mxu0 %v683
        %753 = vmatprep.subr.mxu0 %v688
        %754 = vmatpush1.msra.mxu0 %v687
        %755 = vmatprep.mubr.f32.mxu0 %v500
        %756 = vmatmul.mubr.f32.gmra.mrb[0].mxu0 %v499
        %v757 = vpop.f32.mrb[0].mxu0
        %v758 = vadd.f32 0.0, %v757
        %v759 = vpop.f32.mrb[0].mxu0
        %v760 = vadd.f32 0.0, %v759
        %761 = vmatprep.mubr.f32.mxu0 %v502
        %762 = vmatmul.mubr.f32.gmra.mrb[0].mxu0 %v501
        %v763 = vpop.f32.mrb[0].mxu0
        %v764 = vadd.f32 0.0, %v763
        %v765 = vpop.f32.mrb[0].mxu0
        %v766 = vadd.f32 0.0, %v765
        %767 = vmatprep.mubr.f32.mxu0 %v504
        %768 = vmatmul.mubr.f32.gmra.mrb[0].mxu0 %v503
        %v769 = vpop.f32.mrb[0].mxu0
        %v770 = vadd.f32 0.0, %v769
        %v771 = vpop.f32.mrb[0].mxu0
        %v772 = vadd.f32 0.0, %v771
        %773 = vmatprep.mubr.f32.mxu0 %v506
        %774 = vmatmul.mubr.f32.gmra.mrb[0].mxu0 %v505
        %v775 = vpop.f32.mrb[0].mxu0
        %v776 = vadd.f32 0.0, %v775
        %v777 = vpop.f32.mrb[0].mxu0
        %v778 = vadd.f32 0.0, %v777
        %779 = vmatprep.mubr.f32.mxu0 %v508
        %780 = vmatmul.mubr.f32.gmra.mrb[0].mxu0 %v507
        %v781 = vpop.f32.mrb[0].mxu0
        %v782 = vadd.f32 0.0, %v781
        %v783 = vpop.f32.mrb[0].mxu0
        %v784 = vadd.f32 0.0, %v783
        %785 = vmatprep.mubr.f32.mxu0 %v510
        %786 = vmatmul.mubr.f32.gmra.mrb[0].mxu0 %v509
        %v787 = vpop.f32.mrb[0].mxu0
        %v788 = vadd.f32 0.0, %v787
        %v789 = vpop.f32.mrb[0].mxu0
        %v790 = vadd.f32 0.0, %v789
        %791 = vmatprep.mubr.f32.mxu0 %v512
        %792 = vmatmul.mubr.f32.gmra.mrb[0].mxu0 %v511
        %v793 = vpop.f32.mrb[0].mxu0
        %v794 = vadd.f32 0.0, %v793
        %v795 = vpop.f32.mrb[0].mxu0
        %v796 = vadd.f32 0.0, %v795
        %797 = vmatprep.mubr.f32.mxu0 %v514
        %798 = vmatmul.mubr.f32.gmra.mrb[0].mxu0 %v513
        %v799 = vpop.f32.mrb[0].mxu0
        %v800 = vadd.f32 0.0, %v799
        %v801 = vpop.f32.mrb[0].mxu0
        %v802 = vadd.f32 0.0, %v801
        %803 = vmatprep.mubr.f32.mxu0 %v516
        %804 = vmatmul.mubr.f32.gmra.mrb[0].mxu0 %v515
        %v805 = vpop.f32.mrb[0].mxu0
        %v806 = vadd.f32 0.0, %v805
        %v807 = vpop.f32.mrb[0].mxu0
        %v808 = vadd.f32 0.0, %v807
        %809 = vmatprep.mubr.f32.mxu0 %v518
        %810 = vmatmul.mubr.f32.gmra.mrb[0].mxu0 %v517
        %v811 = vpop.f32.mrb[0].mxu0
        %v812 = vadd.f32 0.0, %v811
        %v813 = vpop.f32.mrb[0].mxu0
        %v814 = vadd.f32 0.0, %v813
        %815 = vmatprep.mubr.f32.mxu0 %v520
        %816 = vmatmul.mubr.f32.gmra.mrb[0].mxu0 %v519
        %v817 = vpop.f32.mrb[0].mxu0
        %v818 = vadd.f32 0.0, %v817
        %v819 = vpop.f32.mrb[0].mxu0
        %v820 = vadd.f32 0.0, %v819
        %821 = vmatprep.mubr.f32.mxu0 %v522
        %822 = vmatmul.mubr.f32.gmra.mrb[0].mxu0 %v521
        %v823 = vpop.f32.mrb[0].mxu0
        %v824 = vadd.f32 0.0, %v823
        %v825 = vpop.f32.mrb[0].mxu0
        %v826 = vadd.f32 0.0, %v825
        %827 = vmatprep.mubr.f32.mxu0 %v524
        %828 = vmatmul.mubr.f32.gmra.mrb[0].mxu0 %v523
        %v829 = vpop.f32.mrb[0].mxu0
        %v830 = vadd.f32 0.0, %v829
        %v831 = vpop.f32.mrb[0].mxu0
        %v832 = vadd.f32 0.0, %v831
        %833 = vmatprep.mubr.f32.mxu0 %v526
        %834 = vmatmul.mubr.f32.gmra.mrb[0].mxu0 %v525
        %v835 = vpop.f32.mrb[0].mxu0
        %v836 = vadd.f32 0.0, %v835
        %v837 = vpop.f32.mrb[0].mxu0
        %v838 = vadd.f32 0.0, %v837
        %839 = vmatprep.mubr.f32.mxu0 %v528
        %840 = vmatmul.mubr.f32.gmra.mrb[0].mxu0 %v527
        %v841 = vpop.f32.mrb[0].mxu0
        %v842 = vadd.f32 0.0, %v841
        %v843 = vpop.f32.mrb[0].mxu0
        %v844 = vadd.f32 0.0, %v843
        %845 = vmatprep.mubr.f32.mxu0 %v530
        %846 = vmatmul.mubr.f32.gmra.mrb[0].mxu0 %v529
        %v847 = vpop.f32.mrb[0].mxu0
        %v848 = vadd.f32 0.0, %v847
        %v849 = vpop.f32.mrb[0].mxu0
        %v850 = vadd.f32 0.0, %v849
        %851 = vmatprep.mubr.f32.mxu0 %v532
        %852 = vmatmul.mubr.f32.gmra.mrb[0].mxu0 %v531
        %v853 = vpop.f32.mrb[0].mxu0
        %v854 = vadd.f32 0.0, %v853
        %v855 = vpop.f32.mrb[0].mxu0
        %v856 = vadd.f32 0.0, %v855
        %857 = vmatprep.mubr.f32.mxu0 %v534
        %858 = vmatmul.mubr.f32.gmra.mrb[0].mxu0 %v533
        %v859 = vpop.f32.mrb[0].mxu0
        %v860 = vadd.f32 0.0, %v859
        %v861 = vpop.f32.mrb[0].mxu0
        %v862 = vadd.f32 0.0, %v861
        %863 = vmatprep.mubr.f32.mxu0 %v536
        %864 = vmatmul.mubr.f32.gmra.mrb[0].mxu0 %v535
        %v865 = vpop.f32.mrb[0].mxu0
        %v866 = vadd.f32 0.0, %v865
        %v867 = vpop.f32.mrb[0].mxu0
        %v868 = vadd.f32 0.0, %v867
        %869 = vmatprep.mubr.f32.mxu0 %v538
        %870 = vmatmul.mubr.f32.gmra.mrb[0].mxu0 %v537
        %v871 = vpop.f32.mrb[0].mxu0
        %v872 = vadd.f32 0.0, %v871
        %v873 = vpop.f32.mrb[0].mxu0
        %v874 = vadd.f32 0.0, %v873
        %875 = vmatprep.mubr.f32.mxu0 %v540
        %876 = vmatmul.mubr.f32.gmra.mrb[0].mxu0 %v539
        %v877 = vpop.f32.mrb[0].mxu0
        %v878 = vadd.f32 0.0, %v877
        %v879 = vpop.f32.mrb[0].mxu0
        %v880 = vadd.f32 0.0, %v879
        %881 = vmatprep.mubr.f32.mxu0 %v542
        %882 = vmatmul.mubr.f32.gmra.mrb[0].mxu0 %v541
        %v883 = vpop.f32.mrb[0].mxu0
        %v884 = vadd.f32 0.0, %v883
        %v885 = vpop.f32.mrb[0].mxu0
        %v886 = vadd.f32 0.0, %v885
        %887 = vmatprep.mubr.f32.mxu0 %v544
        %888 = vmatmul.mubr.f32.gmra.mrb[0].mxu0 %v543
        %v889 = vpop.f32.mrb[0].mxu0
        %v890 = vadd.f32 0.0, %v889
        %v891 = vpop.f32.mrb[0].mxu0
        %v892 = vadd.f32 0.0, %v891
        %893 = vmatprep.mubr.f32.mxu0 %v546
        %894 = vmatmul.mubr.f32.gmra.mrb[0].mxu0 %v545
        %v895 = vpop.f32.mrb[0].mxu0
        %v896 = vadd.f32 0.0, %v895
        %v897 = vpop.f32.mrb[0].mxu0
        %v898 = vadd.f32 0.0, %v897
        %899 = vmatprep.mubr.f32.mxu0 %v548
        %900 = vmatmul.mubr.f32.gmra.mrb[0].mxu0 %v547
        %v901 = vpop.f32.mrb[0].mxu0
        %v902 = vadd.f32 0.0, %v901
        %v903 = vpop.f32.mrb[0].mxu0
        %v904 = vadd.f32 0.0, %v903
        %905 = vmatprep.mubr.f32.mxu0 %v550
        %906 = vmatmul.mubr.f32.gmra.mrb[0].mxu0 %v549
        %v907 = vpop.f32.mrb[0].mxu0
        %v908 = vadd.f32 0.0, %v907
        %v909 = vpop.f32.mrb[0].mxu0
        %v910 = vadd.f32 0.0, %v909
        %911 = vmatprep.mubr.f32.mxu0 %v552
        %912 = vmatmul.mubr.f32.gmra.mrb[0].mxu0 %v551
        %v913 = vpop.f32.mrb[0].mxu0
        %v914 = vadd.f32 0.0, %v913
        %v915 = vpop.f32.mrb[0].mxu0
        %v916 = vadd.f32 0.0, %v915
        %917 = vmatprep.mubr.f32.mxu0 %v554
        %918 = vmatmul.mubr.f32.gmra.mrb[0].mxu0 %v553
        %v919 = vpop.f32.mrb[0].mxu0
        %v920 = vadd.f32 0.0, %v919
        %v921 = vpop.f32.mrb[0].mxu0
        %v922 = vadd.f32 0.0, %v921
        %923 = vmatprep.mubr.f32.mxu0 %v556
        %924 = vmatmul.mubr.f32.gmra.mrb[0].mxu0 %v555
        %v925 = vpop.f32.mrb[0].mxu0
        %v926 = vadd.f32 0.0, %v925
        %v927 = vpop.f32.mrb[0].mxu0
        %v928 = vadd.f32 0.0, %v927
        %929 = vmatprep.mubr.f32.mxu0 %v558
        %930 = vmatmul.mubr.f32.gmra.mrb[0].mxu0 %v557
        %v931 = vpop.f32.mrb[0].mxu0
        %v932 = vadd.f32 0.0, %v931
        %v933 = vpop.f32.mrb[0].mxu0
        %v934 = vadd.f32 0.0, %v933
        %935 = vmatprep.mubr.f32.mxu0 %v560
        %936 = vmatmul.mubr.f32.gmra.mrb[0].mxu0 %v559
        %v937 = vpop.f32.mrb[0].mxu0
        %v938 = vadd.f32 0.0, %v937
        %v939 = vpop.f32.mrb[0].mxu0
        %v940 = vadd.f32 0.0, %v939
        %941 = vmatprep.mubr.f32.mxu0 %v562
        %942 = vmatmul.mubr.f32.gmra.mrb[0].mxu0 %v561
        %v943 = vpop.f32.mrb[0].mxu0
        %v944 = vadd.f32 0.0, %v943
        %v945 = vpop.f32.mrb[0].mxu0
        %v946 = vadd.f32 0.0, %v945
        %947 = vdwg.mxu0
        %948 = vmatprep.subr.mxu0 %v566
        %949 = vmatpush1.msra.mxu0 %v565
        %950 = vmatprep.subr.mxu0 %v570
        %951 = vmatpush1.msra.mxu0 %v569
        %952 = vmatprep.subr.mxu0 %v574
        %953 = vmatpush1.msra.mxu0 %v573
        %954 = vmatprep.subr.mxu0 %v578
        %955 = vmatpush1.msra.mxu0 %v577
        %956 = vmatprep.subr.mxu0 %v582
        %957 = vmatpush1.msra.mxu0 %v581
        %958 = vmatprep.subr.mxu0 %v586
        %959 = vmatpush1.msra.mxu0 %v585
        %960 = vmatprep.subr.mxu0 %v590
        %961 = vmatpush1.msra.mxu0 %v589
        %962 = vmatprep.subr.mxu0 %v594
        %963 = vmatpush1.msra.mxu0 %v593
        %964 = vmatprep.subr.mxu0 %v598
        %965 = vmatpush1.msra.mxu0 %v597
        %966 = vmatprep.subr.mxu0 %v602
        %967 = vmatpush1.msra.mxu0 %v601
        %968 = vmatprep.subr.mxu0 %v606
        %969 = vmatpush1.msra.mxu0 %v605
        %970 = vmatprep.subr.mxu0 %v610
        %971 = vmatpush1.msra.mxu0 %v609
        %972 = vmatprep.subr.mxu0 %v614
        %973 = vmatpush1.msra.mxu0 %v613
        %974 = vmatprep.subr.mxu0 %v618
        %975 = vmatpush1.msra.mxu0 %v617
        %976 = vmatprep.subr.mxu0 %v622
        %977 = vmatpush1.msra.mxu0 %v621
        %978 = vmatprep.subr.mxu0 %v626
        %979 = vmatpush1.msra.mxu0 %v625
        %980 = vmatprep.subr.mxu0 %v630
        %981 = vmatpush1.msra.mxu0 %v629
        %982 = vmatprep.subr.mxu0 %v634
        %983 = vmatpush1.msra.mxu0 %v633
        %984 = vmatprep.subr.mxu0 %v638
        %985 = vmatpush1.msra.mxu0 %v637
        %986 = vmatprep.subr.mxu0 %v642
        %987 = vmatpush1.msra.mxu0 %v641
        %988 = vmatprep.subr.mxu0 %v646
        %989 = vmatpush1.msra.mxu0 %v645
        %990 = vmatprep.subr.mxu0 %v650
        %991 = vmatpush1.msra.mxu0 %v649
        %992 = vmatprep.subr.mxu0 %v654
        %993 = vmatpush1.msra.mxu0 %v653
        %994 = vmatprep.subr.mxu0 %v658
        %995 = vmatpush1.msra.mxu0 %v657
        %996 = vmatprep.subr.mxu0 %v662
        %997 = vmatpush1.msra.mxu0 %v661
        %998 = vmatprep.subr.mxu0 %v666
        %999 = vmatpush1.msra.mxu0 %v665
        %1000 = vmatprep.subr.mxu0 %v670
        %1001 = vmatpush1.msra.mxu0 %v669
        %1002 = vmatprep.subr.mxu0 %v674
        %1003 = vmatpush1.msra.mxu0 %v673
        %1004 = vmatprep.subr.mxu0 %v678
        %1005 = vmatpush1.msra.mxu0 %v677
        %1006 = vmatprep.subr.mxu0 %v682
        %1007 = vmatpush1.msra.mxu0 %v681
        %1008 = vmatprep.subr.mxu0 %v686
        %1009 = vmatpush1.msra.mxu0 %v685
        %1010 = vmatprep.subr.mxu0 %v690
        %1011 = vmatpush1.msra.mxu0 %v689
        %1012 = vmatprep.mubr.f32.mxu0 %v500
        %1013 = vmatmul.mubr.f32.gmra.mrb[0].mxu0 %v499
        %v1014 = vpop.f32.mrb[0].mxu0
        %v1015 = vadd.f32 0.0, %v1014
        %v1016 = vpop.f32.mrb[0].mxu0
        %v1017 = vadd.f32 0.0, %v1016
        %1018 = vmatprep.mubr.f32.mxu0 %v502
        %1019 = vmatmul.mubr.f32.gmra.mrb[0].mxu0 %v501
        %v1020 = vpop.f32.mrb[0].mxu0
        %v1021 = vadd.f32 0.0, %v1020
        %v1022 = vpop.f32.mrb[0].mxu0
        %v1023 = vadd.f32 0.0, %v1022
        %1024 = vmatprep.mubr.f32.mxu0 %v504
        %1025 = vmatmul.mubr.f32.gmra.mrb[0].mxu0 %v503
        %v1026 = vpop.f32.mrb[0].mxu0
        %v1027 = vadd.f32 0.0, %v1026
        %v1028 = vpop.f32.mrb[0].mxu0
        %v1029 = vadd.f32 0.0, %v1028
        %1030 = vmatprep.mubr.f32.mxu0 %v506
        %1031 = vmatmul.mubr.f32.gmra.mrb[0].mxu0 %v505
        %v1032 = vpop.f32.mrb[0].mxu0
        %v1033 = vadd.f32 0.0, %v1032
        %v1034 = vpop.f32.mrb[0].mxu0
        %v1035 = vadd.f32 0.0, %v1034
        %1036 = vmatprep.mubr.f32.mxu0 %v508
        %1037 = vmatmul.mubr.f32.gmra.mrb[0].mxu0 %v507
        %v1038 = vpop.f32.mrb[0].mxu0
        %v1039 = vadd.f32 0.0, %v1038
        %v1040 = vpop.f32.mrb[0].mxu0
        %v1041 = vadd.f32 0.0, %v1040
        %1042 = vmatprep.mubr.f32.mxu0 %v510
        %1043 = vmatmul.mubr.f32.gmra.mrb[0].mxu0 %v509
        %v1044 = vpop.f32.mrb[0].mxu0
        %v1045 = vadd.f32 0.0, %v1044
        %v1046 = vpop.f32.mrb[0].mxu0
        %v1047 = vadd.f32 0.0, %v1046
        %1048 = vmatprep.mubr.f32.mxu0 %v512
        %1049 = vmatmul.mubr.f32.gmra.mrb[0].mxu0 %v511
        %v1050 = vpop.f32.mrb[0].mxu0
        %v1051 = vadd.f32 0.0, %v1050
        %v1052 = vpop.f32.mrb[0].mxu0
        %v1053 = vadd.f32 0.0, %v1052
        %1054 = vmatprep.mubr.f32.mxu0 %v514
        %1055 = vmatmul.mubr.f32.gmra.mrb[0].mxu0 %v513
        %v1056 = vpop.f32.mrb[0].mxu0
        %v1057 = vadd.f32 0.0, %v1056
        %v1058 = vpop.f32.mrb[0].mxu0
        %v1059 = vadd.f32 0.0, %v1058
        %1060 = vmatprep.mubr.f32.mxu0 %v516
        %1061 = vmatmul.mubr.f32.gmra.mrb[0].mxu0 %v515
        %v1062 = vpop.f32.mrb[0].mxu0
        %v1063 = vadd.f32 0.0, %v1062
        %v1064 = vpop.f32.mrb[0].mxu0
        %v1065 = vadd.f32 0.0, %v1064
        %1066 = vmatprep.mubr.f32.mxu0 %v518
        %1067 = vmatmul.mubr.f32.gmra.mrb[0].mxu0 %v517
        %v1068 = vpop.f32.mrb[0].mxu0
        %v1069 = vadd.f32 0.0, %v1068
        %v1070 = vpop.f32.mrb[0].mxu0
        %v1071 = vadd.f32 0.0, %v1070
        %1072 = vmatprep.mubr.f32.mxu0 %v520
        %1073 = vmatmul.mubr.f32.gmra.mrb[0].mxu0 %v519
        %v1074 = vpop.f32.mrb[0].mxu0
        %v1075 = vadd.f32 0.0, %v1074
        %v1076 = vpop.f32.mrb[0].mxu0
        %v1077 = vadd.f32 0.0, %v1076
        %1078 = vmatprep.mubr.f32.mxu0 %v522
        %1079 = vmatmul.mubr.f32.gmra.mrb[0].mxu0 %v521
        %v1080 = vpop.f32.mrb[0].mxu0
        %v1081 = vadd.f32 0.0, %v1080
        %v1082 = vpop.f32.mrb[0].mxu0
        %v1083 = vadd.f32 0.0, %v1082
        %1084 = vmatprep.mubr.f32.mxu0 %v524
        %1085 = vmatmul.mubr.f32.gmra.mrb[0].mxu0 %v523
        %v1086 = vpop.f32.mrb[0].mxu0
        %v1087 = vadd.f32 0.0, %v1086
        %v1088 = vpop.f32.mrb[0].mxu0
        %v1089 = vadd.f32 0.0, %v1088
        %1090 = vmatprep.mubr.f32.mxu0 %v526
        %1091 = vmatmul.mubr.f32.gmra.mrb[0].mxu0 %v525
        %v1092 = vpop.f32.mrb[0].mxu0
        %v1093 = vadd.f32 0.0, %v1092
        %v1094 = vpop.f32.mrb[0].mxu0
        %v1095 = vadd.f32 0.0, %v1094
        %1096 = vmatprep.mubr.f32.mxu0 %v528
        %1097 = vmatmul.mubr.f32.gmra.mrb[0].mxu0 %v527
        %v1098 = vpop.f32.mrb[0].mxu0
        %v1099 = vadd.f32 0.0, %v1098
        %v1100 = vpop.f32.mrb[0].mxu0
        %v1101 = vadd.f32 0.0, %v1100
        %1102 = vmatprep.mubr.f32.mxu0 %v530
        %1103 = vmatmul.mubr.f32.gmra.mrb[0].mxu0 %v529
        %v1104 = vpop.f32.mrb[0].mxu0
        %v1105 = vadd.f32 0.0, %v1104
        %v1106 = vpop.f32.mrb[0].mxu0
        %v1107 = vadd.f32 0.0, %v1106
        %1108 = vmatprep.mubr.f32.mxu0 %v532
        %1109 = vmatmul.mubr.f32.gmra.mrb[0].mxu0 %v531
        %v1110 = vpop.f32.mrb[0].mxu0
        %v1111 = vadd.f32 0.0, %v1110
        %v1112 = vpop.f32.mrb[0].mxu0
        %v1113 = vadd.f32 0.0, %v1112
        %1114 = vmatprep.mubr.f32.mxu0 %v534
        %1115 = vmatmul.mubr.f32.gmra.mrb[0].mxu0 %v533
        %v1116 = vpop.f32.mrb[0].mxu0
        %v1117 = vadd.f32 0.0, %v1116
        %v1118 = vpop.f32.mrb[0].mxu0
        %v1119 = vadd.f32 0.0, %v1118
        %1120 = vmatprep.mubr.f32.mxu0 %v536
        %1121 = vmatmul.mubr.f32.gmra.mrb[0].mxu0 %v535
        %v1122 = vpop.f32.mrb[0].mxu0
        %v1123 = vadd.f32 0.0, %v1122
        %v1124 = vpop.f32.mrb[0].mxu0
        %v1125 = vadd.f32 0.0, %v1124
        %1126 = vmatprep.mubr.f32.mxu0 %v538
        %1127 = vmatmul.mubr.f32.gmra.mrb[0].mxu0 %v537
        %v1128 = vpop.f32.mrb[0].mxu0
        %v1129 = vadd.f32 0.0, %v1128
        %v1130 = vpop.f32.mrb[0].mxu0
        %v1131 = vadd.f32 0.0, %v1130
        %1132 = vmatprep.mubr.f32.mxu0 %v540
        %1133 = vmatmul.mubr.f32.gmra.mrb[0].mxu0 %v539
        %v1134 = vpop.f32.mrb[0].mxu0
        %v1135 = vadd.f32 0.0, %v1134
        %v1136 = vpop.f32.mrb[0].mxu0
        %v1137 = vadd.f32 0.0, %v1136
        %1138 = vmatprep.mubr.f32.mxu0 %v542
        %1139 = vmatmul.mubr.f32.gmra.mrb[0].mxu0 %v541
        %v1140 = vpop.f32.mrb[0].mxu0
        %v1141 = vadd.f32 0.0, %v1140
        %v1142 = vpop.f32.mrb[0].mxu0
        %v1143 = vadd.f32 0.0, %v1142
        %1144 = vmatprep.mubr.f32.mxu0 %v544
        %1145 = vmatmul.mubr.f32.gmra.mrb[0].mxu0 %v543
        %v1146 = vpop.f32.mrb[0].mxu0
        %v1147 = vadd.f32 0.0, %v1146
        %v1148 = vpop.f32.mrb[0].mxu0
        %v1149 = vadd.f32 0.0, %v1148
        %1150 = vmatprep.mubr.f32.mxu0 %v546
        %1151 = vmatmul.mubr.f32.gmra.mrb[0].mxu0 %v545
        %v1152 = vpop.f32.mrb[0].mxu0
        %v1153 = vadd.f32 0.0, %v1152
        %v1154 = vpop.f32.mrb[0].mxu0
        %v1155 = vadd.f32 0.0, %v1154
        %1156 = vmatprep.mubr.f32.mxu0 %v548
        %1157 = vmatmul.mubr.f32.gmra.mrb[0].mxu0 %v547
        %v1158 = vpop.f32.mrb[0].mxu0
        %v1159 = vadd.f32 0.0, %v1158
        %v1160 = vpop.f32.mrb[0].mxu0
        %v1161 = vadd.f32 0.0, %v1160
        %1162 = vmatprep.mubr.f32.mxu0 %v550
        %1163 = vmatmul.mubr.f32.gmra.mrb[0].mxu0 %v549
        %v1164 = vpop.f32.mrb[0].mxu0
        %v1165 = vadd.f32 0.0, %v1164
        %v1166 = vpop.f32.mrb[0].mxu0
        %v1167 = vadd.f32 0.0, %v1166
        %1168 = vmatprep.mubr.f32.mxu0 %v552
        %1169 = vmatmul.mubr.f32.gmra.mrb[0].mxu0 %v551
        %v1170 = vpop.f32.mrb[0].mxu0
        %v1171 = vadd.f32 0.0, %v1170
        %v1172 = vpop.f32.mrb[0].mxu0
        %v1173 = vadd.f32 0.0, %v1172
        %1174 = vmatprep.mubr.f32.mxu0 %v554
        %1175 = vmatmul.mubr.f32.gmra.mrb[0].mxu0 %v553
        %v1176 = vpop.f32.mrb[0].mxu0
        %v1177 = vadd.f32 0.0, %v1176
        %v1178 = vpop.f32.mrb[0].mxu0
        %v1179 = vadd.f32 0.0, %v1178
        %1180 = vmatprep.mubr.f32.mxu0 %v556
        %1181 = vmatmul.mubr.f32.gmra.mrb[0].mxu0 %v555
        %v1182 = vpop.f32.mrb[0].mxu0
        %v1183 = vadd.f32 0.0, %v1182
        %v1184 = vpop.f32.mrb[0].mxu0
        %v1185 = vadd.f32 0.0, %v1184
        %1186 = vmatprep.mubr.f32.mxu0 %v558
        %1187 = vmatmul.mubr.f32.gmra.mrb[0].mxu0 %v557
        %v1188 = vpop.f32.mrb[0].mxu0
        %v1189 = vadd.f32 0.0, %v1188
        %v1190 = vpop.f32.mrb[0].mxu0
        %v1191 = vadd.f32 0.0, %v1190
        %1192 = vmatprep.mubr.f32.mxu0 %v560
        %1193 = vmatmul.mubr.f32.gmra.mrb[0].mxu0 %v559
        %v1194 = vpop.f32.mrb[0].mxu0
        %v1195 = vadd.f32 0.0, %v1194
        %v1196 = vpop.f32.mrb[0].mxu0
        %v1197 = vadd.f32 0.0, %v1196
        %1198 = vmatprep.mubr.f32.mxu0 %v562
        %1199 = vmatmul.mubr.f32.gmra.mrb[0].mxu0 %v561
        %v1200 = vpop.f32.mrb[0].mxu0
        %v1201 = vadd.f32 0.0, %v1200
        %v1202 = vpop.f32.mrb[0].mxu0
        %v1203 = vadd.f32 0.0, %v1202
        %1204 = vdwg.mxu0
        %v1205 = vadd.f32 %v371, %v758
        %v1206 = vadd.f32 %v372, %v760
        %v1207 = vadd.f32 %v373, %v1015
        %v1208 = vadd.f32 %v374, %v1017
        %v1209 = vadd.f32 %v375, %v764
        %v1210 = vadd.f32 %v376, %v766
        %v1211 = vadd.f32 %v377, %v1021
        %v1212 = vadd.f32 %v378, %v1023
        %v1213 = vadd.f32 %v379, %v770
        %v1214 = vadd.f32 %v380, %v772
        %v1215 = vadd.f32 %v381, %v1027
        %v1216 = vadd.f32 %v382, %v1029
        %v1217 = vadd.f32 %v383, %v776
        %v1218 = vadd.f32 %v384, %v778
        %v1219 = vadd.f32 %v385, %v1033
        %v1220 = vadd.f32 %v386, %v1035
        %v1221 = vadd.f32 %v387, %v782
        %v1222 = vadd.f32 %v388, %v784
        %v1223 = vadd.f32 %v389, %v1039
        %v1224 = vadd.f32 %v390, %v1041
        %v1225 = vadd.f32 %v391, %v788
        %v1226 = vadd.f32 %v392, %v790
        %v1227 = vadd.f32 %v393, %v1045
        %v1228 = vadd.f32 %v394, %v1047
        %v1229 = vadd.f32 %v395, %v794
        %v1230 = vadd.f32 %v396, %v796
        %v1231 = vadd.f32 %v397, %v1051
        %v1232 = vadd.f32 %v398, %v1053
        %v1233 = vadd.f32 %v399, %v800
        %v1234 = vadd.f32 %v400, %v802
        %v1235 = vadd.f32 %v401, %v1057
        %v1236 = vadd.f32 %v402, %v1059
        %v1237 = vadd.f32 %v403, %v806
        %v1238 = vadd.f32 %v404, %v808
        %v1239 = vadd.f32 %v405, %v1063
        %v1240 = vadd.f32 %v406, %v1065
        %v1241 = vadd.f32 %v407, %v812
        %v1242 = vadd.f32 %v408, %v814
        %v1243 = vadd.f32 %v409, %v1069
        %v1244 = vadd.f32 %v410, %v1071
        %v1245 = vadd.f32 %v411, %v818
        %v1246 = vadd.f32 %v412, %v820
        %v1247 = vadd.f32 %v413, %v1075
        %v1248 = vadd.f32 %v414, %v1077
        %v1249 = vadd.f32 %v415, %v824
        %v1250 = vadd.f32 %v416, %v826
        %v1251 = vadd.f32 %v417, %v1081
        %v1252 = vadd.f32 %v418, %v1083
        %v1253 = vadd.f32 %v419, %v830
        %v1254 = vadd.f32 %v420, %v832
        %v1255 = vadd.f32 %v421, %v1087
        %v1256 = vadd.f32 %v422, %v1089
        %v1257 = vadd.f32 %v423, %v836
        %v1258 = vadd.f32 %v424, %v838
        %v1259 = vadd.f32 %v425, %v1093
        %v1260 = vadd.f32 %v426, %v1095
        %v1261 = vadd.f32 %v427, %v842
        %v1262 = vadd.f32 %v428, %v844
        %v1263 = vadd.f32 %v429, %v1099
        %v1264 = vadd.f32 %v430, %v1101
        %v1265 = vadd.f32 %v431, %v848
        %v1266 = vadd.f32 %v432, %v850
        %v1267 = vadd.f32 %v433, %v1105
        %v1268 = vadd.f32 %v434, %v1107
        %v1269 = vadd.f32 %v435, %v854
        %v1270 = vadd.f32 %v436, %v856
        %v1271 = vadd.f32 %v437, %v1111
        %v1272 = vadd.f32 %v438, %v1113
        %v1273 = vadd.f32 %v439, %v860
        %v1274 = vadd.f32 %v440, %v862
        %v1275 = vadd.f32 %v441, %v1117
        %v1276 = vadd.f32 %v442, %v1119
        %v1277 = vadd.f32 %v443, %v866
        %v1278 = vadd.f32 %v444, %v868
        %v1279 = vadd.f32 %v445, %v1123
        %v1280 = vadd.f32 %v446, %v1125
        %v1281 = vadd.f32 %v447, %v872
        %v1282 = vadd.f32 %v448, %v874
        %v1283 = vadd.f32 %v449, %v1129
        %v1284 = vadd.f32 %v450, %v1131
        %v1285 = vadd.f32 %v451, %v878
        %v1286 = vadd.f32 %v452, %v880
        %v1287 = vadd.f32 %v453, %v1135
        %v1288 = vadd.f32 %v454, %v1137
        %v1289 = vadd.f32 %v455, %v884
        %v1290 = vadd.f32 %v456, %v886
        %v1291 = vadd.f32 %v457, %v1141
        %v1292 = vadd.f32 %v458, %v1143
        %v1293 = vadd.f32 %v459, %v890
        %v1294 = vadd.f32 %v460, %v892
        %v1295 = vadd.f32 %v461, %v1147
        %v1296 = vadd.f32 %v462, %v1149
        %v1297 = vadd.f32 %v463, %v896
        %v1298 = vadd.f32 %v464, %v898
        %v1299 = vadd.f32 %v465, %v1153
        %v1300 = vadd.f32 %v466, %v1155
        %v1301 = vadd.f32 %v467, %v902
        %v1302 = vadd.f32 %v468, %v904
        %v1303 = vadd.f32 %v469, %v1159
        %v1304 = vadd.f32 %v470, %v1161
        %v1305 = vadd.f32 %v471, %v908
        %v1306 = vadd.f32 %v472, %v910
        %v1307 = vadd.f32 %v473, %v1165
        %v1308 = vadd.f32 %v474, %v1167
        %v1309 = vadd.f32 %v475, %v914
        %v1310 = vadd.f32 %v476, %v916
        %v1311 = vadd.f32 %v477, %v1171
        %v1312 = vadd.f32 %v478, %v1173
        %v1313 = vadd.f32 %v479, %v920
        %v1314 = vadd.f32 %v480, %v922
        %v1315 = vadd.f32 %v481, %v1177
        %v1316 = vadd.f32 %v482, %v1179
        %v1317 = vadd.f32 %v483, %v926
        %v1318 = vadd.f32 %v484, %v928
        %v1319 = vadd.f32 %v485, %v1183
        %v1320 = vadd.f32 %v486, %v1185
        %v1321 = vadd.f32 %v487, %v932
        %v1322 = vadd.f32 %v488, %v934
        %v1323 = vadd.f32 %v489, %v1189
        %v1324 = vadd.f32 %v490, %v1191
        %v1325 = vadd.f32 %v491, %v938
        %v1326 = vadd.f32 %v492, %v940
        %v1327 = vadd.f32 %v493, %v1195
        %v1328 = vadd.f32 %v494, %v1197
        %v1329 = vadd.f32 %v495, %v944
        %v1330 = vadd.f32 %v496, %v946
        %v1331 = vadd.f32 %v497, %v1201
        %v1332 = vadd.f32 %v498, %v1203
        %1333 = vst [vmem:[#allocation2] sm:$0xff] %v1205
        %1334 = vst [vmem:[#allocation2 + $0x8] sm:$0xff] %v1206
        %1335 = vst [vmem:[#allocation2 + $0x10] sm:$0xff] %v1207
        %1336 = vst [vmem:[#allocation2 + $0x18] sm:$0xff] %v1208
        %1337 = vst [vmem:[#allocation2 + $0x20] sm:$0xff] %v1209
        %1338 = vst [vmem:[#allocation2 + $0x28] sm:$0xff] %v1210
        %1339 = vst [vmem:[#allocation2 + $0x30] sm:$0xff] %v1211
        %1340 = vst [vmem:[#allocation2 + $0x38] sm:$0xff] %v1212
        %1341 = vst [vmem:[#allocation2 + $0x40] sm:$0xff] %v1213
        %1342 = vst [vmem:[#allocation2 + $0x48] sm:$0xff] %v1214
        %1343 = vst [vmem:[#allocation2 + $0x50] sm:$0xff] %v1215
        %1344 = vst [vmem:[#allocation2 + $0x58] sm:$0xff] %v1216
        %1345 = vst [vmem:[#allocation2 + $0x60] sm:$0xff] %v1217
        %1346 = vst [vmem:[#allocation2 + $0x68] sm:$0xff] %v1218
        %1347 = vst [vmem:[#allocation2 + $0x70] sm:$0xff] %v1219
        %1348 = vst [vmem:[#allocation2 + $0x78] sm:$0xff] %v1220
        %1349 = vst [vmem:[#allocation2 + $0x80] sm:$0xff] %v1221
        %1350 = vst [vmem:[#allocation2 + $0x88] sm:$0xff] %v1222
        %1351 = vst [vmem:[#allocation2 + $0x90] sm:$0xff] %v1223
        %1352 = vst [vmem:[#allocation2 + $0x98] sm:$0xff] %v1224
        %1353 = vst [vmem:[#allocation2 + $0xa0] sm:$0xff] %v1225
        %1354 = vst [vmem:[#allocation2 + $0xa8] sm:$0xff] %v1226
        %1355 = vst [vmem:[#allocation2 + $0xb0] sm:$0xff] %v1227
        %1356 = vst [vmem:[#allocation2 + $0xb8] sm:$0xff] %v1228
        %1357 = vst [vmem:[#allocation2 + $0xc0] sm:$0xff] %v1229
        %1358 = vst [vmem:[#allocation2 + $0xc8] sm:$0xff] %v1230
        %1359 = vst [vmem:[#allocation2 + $0xd0] sm:$0xff] %v1231
        %1360 = vst [vmem:[#allocation2 + $0xd8] sm:$0xff] %v1232
        %1361 = vst [vmem:[#allocation2 + $0xe0] sm:$0xff] %v1233
        %1362 = vst [vmem:[#allocation2 + $0xe8] sm:$0xff] %v1234
        %1363 = vst [vmem:[#allocation2 + $0xf0] sm:$0xff] %v1235
        %1364 = vst [vmem:[#allocation2 + $0xf8] sm:$0xff] %v1236
        %1365 = vst [vmem:[#allocation2 + $0x100] sm:$0xff] %v1237
        %1366 = vst [vmem:[#allocation2 + $0x108] sm:$0xff] %v1238
        %1367 = vst [vmem:[#allocation2 + $0x110] sm:$0xff] %v1239
        %1368 = vst [vmem:[#allocation2 + $0x118] sm:$0xff] %v1240
        %1369 = vst [vmem:[#allocation2 + $0x120] sm:$0xff] %v1241
        %1370 = vst [vmem:[#allocation2 + $0x128] sm:$0xff] %v1242
        %1371 = vst [vmem:[#allocation2 + $0x130] sm:$0xff] %v1243
        %1372 = vst [vmem:[#allocation2 + $0x138] sm:$0xff] %v1244
        %1373 = vst [vmem:[#allocation2 + $0x140] sm:$0xff] %v1245
        %1374 = vst [vmem:[#allocation2 + $0x148] sm:$0xff] %v1246
        %1375 = vst [vmem:[#allocation2 + $0x150] sm:$0xff] %v1247
        %1376 = vst [vmem:[#allocation2 + $0x158] sm:$0xff] %v1248
        %1377 = vst [vmem:[#allocation2 + $0x160] sm:$0xff] %v1249
        %1378 = vst [vmem:[#allocation2 + $0x168] sm:$0xff] %v1250
        %1379 = vst [vmem:[#allocation2 + $0x170] sm:$0xff] %v1251
        %1380 = vst [vmem:[#allocation2 + $0x178] sm:$0xff] %v1252
        %1381 = vst [vmem:[#allocation2 + $0x180] sm:$0xff] %v1253
        %1382 = vst [vmem:[#allocation2 + $0x188] sm:$0xff] %v1254
        %1383 = vst [vmem:[#allocation2 + $0x190] sm:$0xff] %v1255
        %1384 = vst [vmem:[#allocation2 + $0x198] sm:$0xff] %v1256
        %1385 = vst [vmem:[#allocation2 + $0x1a0] sm:$0xff] %v1257
        %1386 = vst [vmem:[#allocation2 + $0x1a8] sm:$0xff] %v1258
        %1387 = vst [vmem:[#allocation2 + $0x1b0] sm:$0xff] %v1259
        %1388 = vst [vmem:[#allocation2 + $0x1b8] sm:$0xff] %v1260
        %1389 = vst [vmem:[#allocation2 + $0x1c0] sm:$0xff] %v1261
        %1390 = vst [vmem:[#allocation2 + $0x1c8] sm:$0xff] %v1262
        %1391 = vst [vmem:[#allocation2 + $0x1d0] sm:$0xff] %v1263
        %1392 = vst [vmem:[#allocation2 + $0x1d8] sm:$0xff] %v1264
        %1393 = vst [vmem:[#allocation2 + $0x1e0] sm:$0xff] %v1265
        %1394 = vst [vmem:[#allocation2 + $0x1e8] sm:$0xff] %v1266
        %1395 = vst [vmem:[#allocation2 + $0x1f0] sm:$0xff] %v1267
        %1396 = vst [vmem:[#allocation2 + $0x1f8] sm:$0xff] %v1268
        %1397 = vst [vmem:[#allocation2 + $0x200] sm:$0xff] %v1269
        %1398 = vst [vmem:[#allocation2 + $0x208] sm:$0xff] %v1270
        %1399 = vst [vmem:[#allocation2 + $0x210] sm:$0xff] %v1271
        %1400 = vst [vmem:[#allocation2 + $0x218] sm:$0xff] %v1272
        %1401 = vst [vmem:[#allocation2 + $0x220] sm:$0xff] %v1273
        %1402 = vst [vmem:[#allocation2 + $0x228] sm:$0xff] %v1274
        %1403 = vst [vmem:[#allocation2 + $0x230] sm:$0xff] %v1275
        %1404 = vst [vmem:[#allocation2 + $0x238] sm:$0xff] %v1276
        %1405 = vst [vmem:[#allocation2 + $0x240] sm:$0xff] %v1277
        %1406 = vst [vmem:[#allocation2 + $0x248] sm:$0xff] %v1278
        %1407 = vst [vmem:[#allocation2 + $0x250] sm:$0xff] %v1279
        %1408 = vst [vmem:[#allocation2 + $0x258] sm:$0xff] %v1280
        %1409 = vst [vmem:[#allocation2 + $0x260] sm:$0xff] %v1281
        %1410 = vst [vmem:[#allocation2 + $0x268] sm:$0xff] %v1282
        %1411 = vst [vmem:[#allocation2 + $0x270] sm:$0xff] %v1283
        %1412 = vst [vmem:[#allocation2 + $0x278] sm:$0xff] %v1284
        %1413 = vst [vmem:[#allocation2 + $0x280] sm:$0xff] %v1285
        %1414 = vst [vmem:[#allocation2 + $0x288] sm:$0xff] %v1286
        %1415 = vst [vmem:[#allocation2 + $0x290] sm:$0xff] %v1287
        %1416 = vst [vmem:[#allocation2 + $0x298] sm:$0xff] %v1288
        %1417 = vst [vmem:[#allocation2 + $0x2a0] sm:$0xff] %v1289
        %1418 = vst [vmem:[#allocation2 + $0x2a8] sm:$0xff] %v1290
        %1419 = vst [vmem:[#allocation2 + $0x2b0] sm:$0xff] %v1291
        %1420 = vst [vmem:[#allocation2 + $0x2b8] sm:$0xff] %v1292
        %1421 = vst [vmem:[#allocation2 + $0x2c0] sm:$0xff] %v1293
        %1422 = vst [vmem:[#allocation2 + $0x2c8] sm:$0xff] %v1294
        %1423 = vst [vmem:[#allocation2 + $0x2d0] sm:$0xff] %v1295
        %1424 = vst [vmem:[#allocation2 + $0x2d8] sm:$0xff] %v1296
        %1425 = vst [vmem:[#allocation2 + $0x2e0] sm:$0xff] %v1297
        %1426 = vst [vmem:[#allocation2 + $0x2e8] sm:$0xff] %v1298
        %1427 = vst [vmem:[#allocation2 + $0x2f0] sm:$0xff] %v1299
        %1428 = vst [vmem:[#allocation2 + $0x2f8] sm:$0xff] %v1300
        %1429 = vst [vmem:[#allocation2 + $0x300] sm:$0xff] %v1301
        %1430 = vst [vmem:[#allocation2 + $0x308] sm:$0xff] %v1302
        %1431 = vst [vmem:[#allocation2 + $0x310] sm:$0xff] %v1303
        %1432 = vst [vmem:[#allocation2 + $0x318] sm:$0xff] %v1304
        %1433 = vst [vmem:[#allocation2 + $0x320] sm:$0xff] %v1305
        %1434 = vst [vmem:[#allocation2 + $0x328] sm:$0xff] %v1306
        %1435 = vst [vmem:[#allocation2 + $0x330] sm:$0xff] %v1307
        %1436 = vst [vmem:[#allocation2 + $0x338] sm:$0xff] %v1308
        %1437 = vst [vmem:[#allocation2 + $0x340] sm:$0xff] %v1309
        %1438 = vst [vmem:[#allocation2 + $0x348] sm:$0xff] %v1310
        %1439 = vst [vmem:[#allocation2 + $0x350] sm:$0xff] %v1311
        %1440 = vst [vmem:[#allocation2 + $0x358] sm:$0xff] %v1312
        %1441 = vst [vmem:[#allocation2 + $0x360] sm:$0xff] %v1313
        %1442 = vst [vmem:[#allocation2 + $0x368] sm:$0xff] %v1314
        %1443 = vst [vmem:[#allocation2 + $0x370] sm:$0xff] %v1315
        %1444 = vst [vmem:[#allocation2 + $0x378] sm:$0xff] %v1316
        %1445 = vst [vmem:[#allocation2 + $0x380] sm:$0xff] %v1317
        %1446 = vst [vmem:[#allocation2 + $0x388] sm:$0xff] %v1318
        %1447 = vst [vmem:[#allocation2 + $0x390] sm:$0xff] %v1319
        %1448 = vst [vmem:[#allocation2 + $0x398] sm:$0xff] %v1320
        %1449 = vst [vmem:[#allocation2 + $0x3a0] sm:$0xff] %v1321
        %1450 = vst [vmem:[#allocation2 + $0x3a8] sm:$0xff] %v1322
        %1451 = vst [vmem:[#allocation2 + $0x3b0] sm:$0xff] %v1323
        %1452 = vst [vmem:[#allocation2 + $0x3b8] sm:$0xff] %v1324
        %1453 = vst [vmem:[#allocation2 + $0x3c0] sm:$0xff] %v1325
        %1454 = vst [vmem:[#allocation2 + $0x3c8] sm:$0xff] %v1326
        %1455 = vst [vmem:[#allocation2 + $0x3d0] sm:$0xff] %v1327
        %1456 = vst [vmem:[#allocation2 + $0x3d8] sm:$0xff] %v1328
        %1457 = vst [vmem:[#allocation2 + $0x3e0] sm:$0xff] %v1329
        %1458 = vst [vmem:[#allocation2 + $0x3e8] sm:$0xff] %v1330
        %1459 = vst [vmem:[#allocation2 + $0x3f0] sm:$0xff] %v1331
        %1460 = vst [vmem:[#allocation2 + $0x3f8] sm:$0xff] %v1332
        // Predicated region
        $region41: #{tpu_custom_call.1} parent=27 // pred_check
          %p1461 = pneg %p239
        $region42: #{tpu_custom_call.1} parent=27 // pred_check_branch
          %1463 = sbr.rel (%p1461) target = $region44
        $region43: #{tpu_custom_call.1} parent=27 // pred_region
          %v1464 = vld [vmem:[#allocation2] sm:$0xff]
          %v1465 = vld [vmem:[#allocation2 + $0x8] sm:$0xff]
          %v1466 = vld [vmem:[#allocation2 + $0x10] sm:$0xff]
          %v1467 = vld [vmem:[#allocation2 + $0x18] sm:$0xff]
          %v1468 = vld [vmem:[#allocation2 + $0x20] sm:$0xff]
          %v1469 = vld [vmem:[#allocation2 + $0x28] sm:$0xff]
          %v1470 = vld [vmem:[#allocation2 + $0x30] sm:$0xff]
          %v1471 = vld [vmem:[#allocation2 + $0x38] sm:$0xff]
          %v1472 = vld [vmem:[#allocation2 + $0x40] sm:$0xff]
          %v1473 = vld [vmem:[#allocation2 + $0x48] sm:$0xff]
          %v1474 = vld [vmem:[#allocation2 + $0x50] sm:$0xff]
          %v1475 = vld [vmem:[#allocation2 + $0x58] sm:$0xff]
          %v1476 = vld [vmem:[#allocation2 + $0x60] sm:$0xff]
          %v1477 = vld [vmem:[#allocation2 + $0x68] sm:$0xff]
          %v1478 = vld [vmem:[#allocation2 + $0x70] sm:$0xff]
          %v1479 = vld [vmem:[#allocation2 + $0x78] sm:$0xff]
          %v1480 = vld [vmem:[#allocation2 + $0x80] sm:$0xff]
          %v1481 = vld [vmem:[#allocation2 + $0x88] sm:$0xff]
          %v1482 = vld [vmem:[#allocation2 + $0x90] sm:$0xff]
          %v1483 = vld [vmem:[#allocation2 + $0x98] sm:$0xff]
          %v1484 = vld [vmem:[#allocation2 + $0xa0] sm:$0xff]
          %v1485 = vld [vmem:[#allocation2 + $0xa8] sm:$0xff]
          %v1486 = vld [vmem:[#allocation2 + $0xb0] sm:$0xff]
          %v1487 = vld [vmem:[#allocation2 + $0xb8] sm:$0xff]
          %v1488 = vld [vmem:[#allocation2 + $0xc0] sm:$0xff]
          %v1489 = vld [vmem:[#allocation2 + $0xc8] sm:$0xff]
          %v1490 = vld [vmem:[#allocation2 + $0xd0] sm:$0xff]
          %v1491 = vld [vmem:[#allocation2 + $0xd8] sm:$0xff]
          %v1492 = vld [vmem:[#allocation2 + $0xe0] sm:$0xff]
          %v1493 = vld [vmem:[#allocation2 + $0xe8] sm:$0xff]
          %v1494 = vld [vmem:[#allocation2 + $0xf0] sm:$0xff]
          %v1495 = vld [vmem:[#allocation2 + $0xf8] sm:$0xff]
          %v1496 = vld [vmem:[#allocation2 + $0x100] sm:$0xff]
          %v1497 = vld [vmem:[#allocation2 + $0x108] sm:$0xff]
          %v1498 = vld [vmem:[#allocation2 + $0x110] sm:$0xff]
          %v1499 = vld [vmem:[#allocation2 + $0x118] sm:$0xff]
          %v1500 = vld [vmem:[#allocation2 + $0x120] sm:$0xff]
          %v1501 = vld [vmem:[#allocation2 + $0x128] sm:$0xff]
          %v1502 = vld [vmem:[#allocation2 + $0x130] sm:$0xff]
          %v1503 = vld [vmem:[#allocation2 + $0x138] sm:$0xff]
          %v1504 = vld [vmem:[#allocation2 + $0x140] sm:$0xff]
          %v1505 = vld [vmem:[#allocation2 + $0x148] sm:$0xff]
          %v1506 = vld [vmem:[#allocation2 + $0x150] sm:$0xff]
          %v1507 = vld [vmem:[#allocation2 + $0x158] sm:$0xff]
          %v1508 = vld [vmem:[#allocation2 + $0x160] sm:$0xff]
          %v1509 = vld [vmem:[#allocation2 + $0x168] sm:$0xff]
          %v1510 = vld [vmem:[#allocation2 + $0x170] sm:$0xff]
          %v1511 = vld [vmem:[#allocation2 + $0x178] sm:$0xff]
          %v1512 = vld [vmem:[#allocation2 + $0x180] sm:$0xff]
          %v1513 = vld [vmem:[#allocation2 + $0x188] sm:$0xff]
          %v1514 = vld [vmem:[#allocation2 + $0x190] sm:$0xff]
          %v1515 = vld [vmem:[#allocation2 + $0x198] sm:$0xff]
          %v1516 = vld [vmem:[#allocation2 + $0x1a0] sm:$0xff]
          %v1517 = vld [vmem:[#allocation2 + $0x1a8] sm:$0xff]
          %v1518 = vld [vmem:[#allocation2 + $0x1b0] sm:$0xff]
          %v1519 = vld [vmem:[#allocation2 + $0x1b8] sm:$0xff]
          %v1520 = vld [vmem:[#allocation2 + $0x1c0] sm:$0xff]
          %v1521 = vld [vmem:[#allocation2 + $0x1c8] sm:$0xff]
          %v1522 = vld [vmem:[#allocation2 + $0x1d0] sm:$0xff]
          %v1523 = vld [vmem:[#allocation2 + $0x1d8] sm:$0xff]
          %v1524 = vld [vmem:[#allocation2 + $0x1e0] sm:$0xff]
          %v1525 = vld [vmem:[#allocation2 + $0x1e8] sm:$0xff]
          %v1526 = vld [vmem:[#allocation2 + $0x1f0] sm:$0xff]
          %v1527 = vld [vmem:[#allocation2 + $0x1f8] sm:$0xff]
          %v1528 = vld [vmem:[#allocation2 + $0x200] sm:$0xff]
          %v1529 = vld [vmem:[#allocation2 + $0x208] sm:$0xff]
          %v1530 = vld [vmem:[#allocation2 + $0x210] sm:$0xff]
          %v1531 = vld [vmem:[#allocation2 + $0x218] sm:$0xff]
          %v1532 = vld [vmem:[#allocation2 + $0x220] sm:$0xff]
          %v1533 = vld [vmem:[#allocation2 + $0x228] sm:$0xff]
          %v1534 = vld [vmem:[#allocation2 + $0x230] sm:$0xff]
          %v1535 = vld [vmem:[#allocation2 + $0x238] sm:$0xff]
          %v1536 = vld [vmem:[#allocation2 + $0x240] sm:$0xff]
          %v1537 = vld [vmem:[#allocation2 + $0x248] sm:$0xff]
          %v1538 = vld [vmem:[#allocation2 + $0x250] sm:$0xff]
          %v1539 = vld [vmem:[#allocation2 + $0x258] sm:$0xff]
          %v1540 = vld [vmem:[#allocation2 + $0x260] sm:$0xff]
          %v1541 = vld [vmem:[#allocation2 + $0x268] sm:$0xff]
          %v1542 = vld [vmem:[#allocation2 + $0x270] sm:$0xff]
          %v1543 = vld [vmem:[#allocation2 + $0x278] sm:$0xff]
          %v1544 = vld [vmem:[#allocation2 + $0x280] sm:$0xff]
          %v1545 = vld [vmem:[#allocation2 + $0x288] sm:$0xff]
          %v1546 = vld [vmem:[#allocation2 + $0x290] sm:$0xff]
          %v1547 = vld [vmem:[#allocation2 + $0x298] sm:$0xff]
          %v1548 = vld [vmem:[#allocation2 + $0x2a0] sm:$0xff]
          %v1549 = vld [vmem:[#allocation2 + $0x2a8] sm:$0xff]
          %v1550 = vld [vmem:[#allocation2 + $0x2b0] sm:$0xff]
          %v1551 = vld [vmem:[#allocation2 + $0x2b8] sm:$0xff]
          %v1552 = vld [vmem:[#allocation2 + $0x2c0] sm:$0xff]
          %v1553 = vld [vmem:[#allocation2 + $0x2c8] sm:$0xff]
          %v1554 = vld [vmem:[#allocation2 + $0x2d0] sm:$0xff]
          %v1555 = vld [vmem:[#allocation2 + $0x2d8] sm:$0xff]
          %v1556 = vld [vmem:[#allocation2 + $0x2e0] sm:$0xff]
          %v1557 = vld [vmem:[#allocation2 + $0x2e8] sm:$0xff]
          %v1558 = vld [vmem:[#allocation2 + $0x2f0] sm:$0xff]
          %v1559 = vld [vmem:[#allocation2 + $0x2f8] sm:$0xff]
          %v1560 = vld [vmem:[#allocation2 + $0x300] sm:$0xff]
          %v1561 = vld [vmem:[#allocation2 + $0x308] sm:$0xff]
          %v1562 = vld [vmem:[#allocation2 + $0x310] sm:$0xff]
          %v1563 = vld [vmem:[#allocation2 + $0x318] sm:$0xff]
          %v1564 = vld [vmem:[#allocation2 + $0x320] sm:$0xff]
          %v1565 = vld [vmem:[#allocation2 + $0x328] sm:$0xff]
          %v1566 = vld [vmem:[#allocation2 + $0x330] sm:$0xff]
          %v1567 = vld [vmem:[#allocation2 + $0x338] sm:$0xff]
          %v1568 = vld [vmem:[#allocation2 + $0x340] sm:$0xff]
          %v1569 = vld [vmem:[#allocation2 + $0x348] sm:$0xff]
          %v1570 = vld [vmem:[#allocation2 + $0x350] sm:$0xff]
          %v1571 = vld [vmem:[#allocation2 + $0x358] sm:$0xff]
          %v1572 = vld [vmem:[#allocation2 + $0x360] sm:$0xff]
          %v1573 = vld [vmem:[#allocation2 + $0x368] sm:$0xff]
          %v1574 = vld [vmem:[#allocation2 + $0x370] sm:$0xff]
          %v1575 = vld [vmem:[#allocation2 + $0x378] sm:$0xff]
          %v1576 = vld [vmem:[#allocation2 + $0x380] sm:$0xff]
          %v1577 = vld [vmem:[#allocation2 + $0x388] sm:$0xff]
          %v1578 = vld [vmem:[#allocation2 + $0x390] sm:$0xff]
          %v1579 = vld [vmem:[#allocation2 + $0x398] sm:$0xff]
          %v1580 = vld [vmem:[#allocation2 + $0x3a0] sm:$0xff]
          %v1581 = vld [vmem:[#allocation2 + $0x3a8] sm:$0xff]
          %v1582 = vld [vmem:[#allocation2 + $0x3b0] sm:$0xff]
          %v1583 = vld [vmem:[#allocation2 + $0x3b8] sm:$0xff]
          %v1584 = vld [vmem:[#allocation2 + $0x3c0] sm:$0xff]
          %v1585 = vld [vmem:[#allocation2 + $0x3c8] sm:$0xff]
          %v1586 = vld [vmem:[#allocation2 + $0x3d0] sm:$0xff]
          %v1587 = vld [vmem:[#allocation2 + $0x3d8] sm:$0xff]
          %v1588 = vld [vmem:[#allocation2 + $0x3e0] sm:$0xff]
          %v1589 = vld [vmem:[#allocation2 + $0x3e8] sm:$0xff]
          %v1590 = vld [vmem:[#allocation2 + $0x3f0] sm:$0xff]
          %v1591 = vld [vmem:[#allocation2 + $0x3f8] sm:$0xff]
          %v1592 = vpack.c.bf16 %v1468, %v1464
          %v1593 = vpack.c.bf16 %v1469, %v1465
          %v1594 = vpack.c.bf16 %v1470, %v1466
          %v1595 = vpack.c.bf16 %v1471, %v1467
          %v1596 = vpack.c.bf16 %v1476, %v1472
          %v1597 = vpack.c.bf16 %v1477, %v1473
          %v1598 = vpack.c.bf16 %v1478, %v1474
          %v1599 = vpack.c.bf16 %v1479, %v1475
          %v1600 = vpack.c.bf16 %v1484, %v1480
          %v1601 = vpack.c.bf16 %v1485, %v1481
          %v1602 = vpack.c.bf16 %v1486, %v1482
          %v1603 = vpack.c.bf16 %v1487, %v1483
          %v1604 = vpack.c.bf16 %v1492, %v1488
          %v1605 = vpack.c.bf16 %v1493, %v1489
          %v1606 = vpack.c.bf16 %v1494, %v1490
          %v1607 = vpack.c.bf16 %v1495, %v1491
          %v1608 = vpack.c.bf16 %v1500, %v1496
          %v1609 = vpack.c.bf16 %v1501, %v1497
          %v1610 = vpack.c.bf16 %v1502, %v1498
          %v1611 = vpack.c.bf16 %v1503, %v1499
          %v1612 = vpack.c.bf16 %v1508, %v1504
          %v1613 = vpack.c.bf16 %v1509, %v1505
          %v1614 = vpack.c.bf16 %v1510, %v1506
          %v1615 = vpack.c.bf16 %v1511, %v1507
          %v1616 = vpack.c.bf16 %v1516, %v1512
          %v1617 = vpack.c.bf16 %v1517, %v1513
          %v1618 = vpack.c.bf16 %v1518, %v1514
          %v1619 = vpack.c.bf16 %v1519, %v1515
          %v1620 = vpack.c.bf16 %v1524, %v1520
          %v1621 = vpack.c.bf16 %v1525, %v1521
          %v1622 = vpack.c.bf16 %v1526, %v1522
          %v1623 = vpack.c.bf16 %v1527, %v1523
          %v1624 = vpack.c.bf16 %v1532, %v1528
          %v1625 = vpack.c.bf16 %v1533, %v1529
          %v1626 = vpack.c.bf16 %v1534, %v1530
          %v1627 = vpack.c.bf16 %v1535, %v1531
          %v1628 = vpack.c.bf16 %v1540, %v1536
          %v1629 = vpack.c.bf16 %v1541, %v1537
          %v1630 = vpack.c.bf16 %v1542, %v1538
          %v1631 = vpack.c.bf16 %v1543, %v1539
          %v1632 = vpack.c.bf16 %v1548, %v1544
          %v1633 = vpack.c.bf16 %v1549, %v1545
          %v1634 = vpack.c.bf16 %v1550, %v1546
          %v1635 = vpack.c.bf16 %v1551, %v1547
          %v1636 = vpack.c.bf16 %v1556, %v1552
          %v1637 = vpack.c.bf16 %v1557, %v1553
          %v1638 = vpack.c.bf16 %v1558, %v1554
          %v1639 = vpack.c.bf16 %v1559, %v1555
          %v1640 = vpack.c.bf16 %v1564, %v1560
          %v1641 = vpack.c.bf16 %v1565, %v1561
          %v1642 = vpack.c.bf16 %v1566, %v1562
          %v1643 = vpack.c.bf16 %v1567, %v1563
          %v1644 = vpack.c.bf16 %v1572, %v1568
          %v1645 = vpack.c.bf16 %v1573, %v1569
          %v1646 = vpack.c.bf16 %v1574, %v1570
          %v1647 = vpack.c.bf16 %v1575, %v1571
          %v1648 = vpack.c.bf16 %v1580, %v1576
          %v1649 = vpack.c.bf16 %v1581, %v1577
          %v1650 = vpack.c.bf16 %v1582, %v1578
          %v1651 = vpack.c.bf16 %v1583, %v1579
          %v1652 = vpack.c.bf16 %v1588, %v1584
          %v1653 = vpack.c.bf16 %v1589, %v1585
          %v1654 = vpack.c.bf16 %v1590, %v1586
          %v1655 = vpack.c.bf16 %v1591, %v1587
          %v1720 = vunpack.c.l.b16 %v1592
          %v1721 = vunpack.c.l.b16 %v1593
          %v1722 = vunpack.c.l.b16 %v1594
          %v1723 = vunpack.c.l.b16 %v1595
          %v1724 = vunpack.c.h.b16 %v1592
          %v1725 = vunpack.c.h.b16 %v1593
          %v1726 = vunpack.c.h.b16 %v1594
          %v1727 = vunpack.c.h.b16 %v1595
          %v1728 = vunpack.c.l.b16 %v1596
          %v1729 = vunpack.c.l.b16 %v1597
          %v1730 = vunpack.c.l.b16 %v1598
          %v1731 = vunpack.c.l.b16 %v1599
          %v1732 = vunpack.c.h.b16 %v1596
          %v1733 = vunpack.c.h.b16 %v1597
          %v1734 = vunpack.c.h.b16 %v1598
          %v1735 = vunpack.c.h.b16 %v1599
          %v1736 = vunpack.c.l.b16 %v1600
          %v1737 = vunpack.c.l.b16 %v1601
          %v1738 = vunpack.c.l.b16 %v1602
          %v1739 = vunpack.c.l.b16 %v1603
          %v1740 = vunpack.c.h.b16 %v1600
          %v1741 = vunpack.c.h.b16 %v1601
          %v1742 = vunpack.c.h.b16 %v1602
          %v1743 = vunpack.c.h.b16 %v1603
          %v1744 = vunpack.c.l.b16 %v1604
          %v1745 = vunpack.c.l.b16 %v1605
          %v1746 = vunpack.c.l.b16 %v1606
          %v1747 = vunpack.c.l.b16 %v1607
          %v1748 = vunpack.c.h.b16 %v1604
          %v1749 = vunpack.c.h.b16 %v1605
          %v1750 = vunpack.c.h.b16 %v1606
          %v1751 = vunpack.c.h.b16 %v1607
          %v1752 = vunpack.c.l.b16 %v1608
          %v1753 = vunpack.c.l.b16 %v1609
          %v1754 = vunpack.c.l.b16 %v1610
          %v1755 = vunpack.c.l.b16 %v1611
          %v1756 = vunpack.c.h.b16 %v1608
          %v1757 = vunpack.c.h.b16 %v1609
          %v1758 = vunpack.c.h.b16 %v1610
          %v1759 = vunpack.c.h.b16 %v1611
          %v1760 = vunpack.c.l.b16 %v1612
          %v1761 = vunpack.c.l.b16 %v1613
          %v1762 = vunpack.c.l.b16 %v1614
          %v1763 = vunpack.c.l.b16 %v1615
          %v1764 = vunpack.c.h.b16 %v1612
          %v1765 = vunpack.c.h.b16 %v1613
          %v1766 = vunpack.c.h.b16 %v1614
          %v1767 = vunpack.c.h.b16 %v1615
          %v1768 = vunpack.c.l.b16 %v1616
          %v1769 = vunpack.c.l.b16 %v1617
          %v1770 = vunpack.c.l.b16 %v1618
          %v1771 = vunpack.c.l.b16 %v1619
          %v1772 = vunpack.c.h.b16 %v1616
          %v1773 = vunpack.c.h.b16 %v1617
          %v1774 = vunpack.c.h.b16 %v1618
          %v1775 = vunpack.c.h.b16 %v1619
          %v1776 = vunpack.c.l.b16 %v1620
          %v1777 = vunpack.c.l.b16 %v1621
          %v1778 = vunpack.c.l.b16 %v1622
          %v1779 = vunpack.c.l.b16 %v1623
          %v1780 = vunpack.c.h.b16 %v1620
          %v1781 = vunpack.c.h.b16 %v1621
          %v1782 = vunpack.c.h.b16 %v1622
          %v1783 = vunpack.c.h.b16 %v1623
          %v1784 = vunpack.c.l.b16 %v1624
          %v1785 = vunpack.c.l.b16 %v1625
          %v1786 = vunpack.c.l.b16 %v1626
          %v1787 = vunpack.c.l.b16 %v1627
          %v1788 = vunpack.c.h.b16 %v1624
          %v1789 = vunpack.c.h.b16 %v1625
          %v1790 = vunpack.c.h.b16 %v1626
          %v1791 = vunpack.c.h.b16 %v1627
          %v1792 = vunpack.c.l.b16 %v1628
          %v1793 = vunpack.c.l.b16 %v1629
          %v1794 = vunpack.c.l.b16 %v1630
          %v1795 = vunpack.c.l.b16 %v1631
          %v1796 = vunpack.c.h.b16 %v1628
          %v1797 = vunpack.c.h.b16 %v1629
          %v1798 = vunpack.c.h.b16 %v1630
          %v1799 = vunpack.c.h.b16 %v1631
          %v1800 = vunpack.c.l.b16 %v1632
          %v1801 = vunpack.c.l.b16 %v1633
          %v1802 = vunpack.c.l.b16 %v1634
          %v1803 = vunpack.c.l.b16 %v1635
          %v1804 = vunpack.c.h.b16 %v1632
          %v1805 = vunpack.c.h.b16 %v1633
          %v1806 = vunpack.c.h.b16 %v1634
          %v1807 = vunpack.c.h.b16 %v1635
          %v1808 = vunpack.c.l.b16 %v1636
          %v1809 = vunpack.c.l.b16 %v1637
          %v1810 = vunpack.c.l.b16 %v1638
          %v1811 = vunpack.c.l.b16 %v1639
          %v1812 = vunpack.c.h.b16 %v1636
          %v1813 = vunpack.c.h.b16 %v1637
          %v1814 = vunpack.c.h.b16 %v1638
          %v1815 = vunpack.c.h.b16 %v1639
          %v1816 = vunpack.c.l.b16 %v1640
          %v1817 = vunpack.c.l.b16 %v1641
          %v1818 = vunpack.c.l.b16 %v1642
          %v1819 = vunpack.c.l.b16 %v1643
          %v1820 = vunpack.c.h.b16 %v1640
          %v1821 = vunpack.c.h.b16 %v1641
          %v1822 = vunpack.c.h.b16 %v1642
          %v1823 = vunpack.c.h.b16 %v1643
          %v1824 = vunpack.c.l.b16 %v1644
          %v1825 = vunpack.c.l.b16 %v1645
          %v1826 = vunpack.c.l.b16 %v1646
          %v1827 = vunpack.c.l.b16 %v1647
          %v1828 = vunpack.c.h.b16 %v1644
          %v1829 = vunpack.c.h.b16 %v1645
          %v1830 = vunpack.c.h.b16 %v1646
          %v1831 = vunpack.c.h.b16 %v1647
          %v1832 = vunpack.c.l.b16 %v1648
          %v1833 = vunpack.c.l.b16 %v1649
          %v1834 = vunpack.c.l.b16 %v1650
          %v1835 = vunpack.c.l.b16 %v1651
          %v1836 = vunpack.c.h.b16 %v1648
          %v1837 = vunpack.c.h.b16 %v1649
          %v1838 = vunpack.c.h.b16 %v1650
          %v1839 = vunpack.c.h.b16 %v1651
          %v1840 = vunpack.c.l.b16 %v1652
          %v1841 = vunpack.c.l.b16 %v1653
          %v1842 = vunpack.c.l.b16 %v1654
          %v1843 = vunpack.c.l.b16 %v1655
          %v1844 = vunpack.c.h.b16 %v1652
          %v1845 = vunpack.c.h.b16 %v1653
          %v1846 = vunpack.c.h.b16 %v1654
          %v1847 = vunpack.c.h.b16 %v1655
          %v1848 = vpack.c.b16 %v1721, %v1720
          %v1849 = vpack.c.b16 %v1723, %v1722
          %v1850 = vpack.c.b16 %v1725, %v1724
          %v1851 = vpack.c.b16 %v1727, %v1726
          %v1852 = vpack.c.b16 %v1729, %v1728
          %v1853 = vpack.c.b16 %v1731, %v1730
          %v1854 = vpack.c.b16 %v1733, %v1732
          %v1855 = vpack.c.b16 %v1735, %v1734
          %v1856 = vpack.c.b16 %v1737, %v1736
          %v1857 = vpack.c.b16 %v1739, %v1738
          %v1858 = vpack.c.b16 %v1741, %v1740
          %v1859 = vpack.c.b16 %v1743, %v1742
          %v1860 = vpack.c.b16 %v1745, %v1744
          %v1861 = vpack.c.b16 %v1747, %v1746
          %v1862 = vpack.c.b16 %v1749, %v1748
          %v1863 = vpack.c.b16 %v1751, %v1750
          %v1864 = vpack.c.b16 %v1753, %v1752
          %v1865 = vpack.c.b16 %v1755, %v1754
          %v1866 = vpack.c.b16 %v1757, %v1756
          %v1867 = vpack.c.b16 %v1759, %v1758
          %v1868 = vpack.c.b16 %v1761, %v1760
          %v1869 = vpack.c.b16 %v1763, %v1762
          %v1870 = vpack.c.b16 %v1765, %v1764
          %v1871 = vpack.c.b16 %v1767, %v1766
          %v1872 = vpack.c.b16 %v1769, %v1768
          %v1873 = vpack.c.b16 %v1771, %v1770
          %v1874 = vpack.c.b16 %v1773, %v1772
          %v1875 = vpack.c.b16 %v1775, %v1774
          %v1876 = vpack.c.b16 %v1777, %v1776
          %v1877 = vpack.c.b16 %v1779, %v1778
          %v1878 = vpack.c.b16 %v1781, %v1780
          %v1879 = vpack.c.b16 %v1783, %v1782
          %v1880 = vpack.c.b16 %v1785, %v1784
          %v1881 = vpack.c.b16 %v1787, %v1786
          %v1882 = vpack.c.b16 %v1789, %v1788
          %v1883 = vpack.c.b16 %v1791, %v1790
          %v1884 = vpack.c.b16 %v1793, %v1792
          %v1885 = vpack.c.b16 %v1795, %v1794
          %v1886 = vpack.c.b16 %v1797, %v1796
          %v1887 = vpack.c.b16 %v1799, %v1798
          %v1888 = vpack.c.b16 %v1801, %v1800
          %v1889 = vpack.c.b16 %v1803, %v1802
          %v1890 = vpack.c.b16 %v1805, %v1804
          %v1891 = vpack.c.b16 %v1807, %v1806
          %v1892 = vpack.c.b16 %v1809, %v1808
          %v1893 = vpack.c.b16 %v1811, %v1810
          %v1894 = vpack.c.b16 %v1813, %v1812
          %v1895 = vpack.c.b16 %v1815, %v1814
          %v1896 = vpack.c.b16 %v1817, %v1816
          %v1897 = vpack.c.b16 %v1819, %v1818
          %v1898 = vpack.c.b16 %v1821, %v1820
          %v1899 = vpack.c.b16 %v1823, %v1822
          %v1900 = vpack.c.b16 %v1825, %v1824
          %v1901 = vpack.c.b16 %v1827, %v1826
          %v1902 = vpack.c.b16 %v1829, %v1828
          %v1903 = vpack.c.b16 %v1831, %v1830
          %v1904 = vpack.c.b16 %v1833, %v1832
          %v1905 = vpack.c.b16 %v1835, %v1834
          %v1906 = vpack.c.b16 %v1837, %v1836
          %v1907 = vpack.c.b16 %v1839, %v1838
          %v1908 = vpack.c.b16 %v1841, %v1840
          %v1909 = vpack.c.b16 %v1843, %v1842
          %v1910 = vpack.c.b16 %v1845, %v1844
          %v1911 = vpack.c.b16 %v1847, %v1846
          %1976 = vst [vmem:[%s232] sm:$0xff] %v1848
          %1977 = vst [vmem:[%s232 + $0x8] sm:$0xff] %v1849
          %1978 = vst [vmem:[%s232 + $0x10] sm:$0xff] %v1850
          %1979 = vst [vmem:[%s232 + $0x18] sm:$0xff] %v1851
          %1980 = vst [vmem:[%s232 + $0x20] sm:$0xff] %v1852
          %1981 = vst [vmem:[%s232 + $0x28] sm:$0xff] %v1853
          %1982 = vst [vmem:[%s232 + $0x30] sm:$0xff] %v1854
          %1983 = vst [vmem:[%s232 + $0x38] sm:$0xff] %v1855
          %1984 = vst [vmem:[%s232 + $0x40] sm:$0xff] %v1856
          %1985 = vst [vmem:[%s232 + $0x48] sm:$0xff] %v1857
          %1986 = vst [vmem:[%s232 + $0x50] sm:$0xff] %v1858
          %1987 = vst [vmem:[%s232 + $0x58] sm:$0xff] %v1859
          %1988 = vst [vmem:[%s232 + $0x60] sm:$0xff] %v1860
          %1989 = vst [vmem:[%s232 + $0x68] sm:$0xff] %v1861
          %1990 = vst [vmem:[%s232 + $0x70] sm:$0xff] %v1862
          %1991 = vst [vmem:[%s232 + $0x78] sm:$0xff] %v1863
          %1992 = vst [vmem:[%s232 + $0x80] sm:$0xff] %v1864
          %1993 = vst [vmem:[%s232 + $0x88] sm:$0xff] %v1865
          %1994 = vst [vmem:[%s232 + $0x90] sm:$0xff] %v1866
          %1995 = vst [vmem:[%s232 + $0x98] sm:$0xff] %v1867
          %1996 = vst [vmem:[%s232 + $0xa0] sm:$0xff] %v1868
          %1997 = vst [vmem:[%s232 + $0xa8] sm:$0xff] %v1869
          %1998 = vst [vmem:[%s232 + $0xb0] sm:$0xff] %v1870
          %1999 = vst [vmem:[%s232 + $0xb8] sm:$0xff] %v1871
          %2000 = vst [vmem:[%s232 + $0xc0] sm:$0xff] %v1872
          %2001 = vst [vmem:[%s232 + $0xc8] sm:$0xff] %v1873
          %2002 = vst [vmem:[%s232 + $0xd0] sm:$0xff] %v1874
          %2003 = vst [vmem:[%s232 + $0xd8] sm:$0xff] %v1875
          %2004 = vst [vmem:[%s232 + $0xe0] sm:$0xff] %v1876
          %2005 = vst [vmem:[%s232 + $0xe8] sm:$0xff] %v1877
          %2006 = vst [vmem:[%s232 + $0xf0] sm:$0xff] %v1878
          %2007 = vst [vmem:[%s232 + $0xf8] sm:$0xff] %v1879
          %2008 = vst [vmem:[%s232 + $0x100] sm:$0xff] %v1880
          %2009 = vst [vmem:[%s232 + $0x108] sm:$0xff] %v1881
          %2010 = vst [vmem:[%s232 + $0x110] sm:$0xff] %v1882
          %2011 = vst [vmem:[%s232 + $0x118] sm:$0xff] %v1883
          %2012 = vst [vmem:[%s232 + $0x120] sm:$0xff] %v1884
          %2013 = vst [vmem:[%s232 + $0x128] sm:$0xff] %v1885
          %2014 = vst [vmem:[%s232 + $0x130] sm:$0xff] %v1886
          %2015 = vst [vmem:[%s232 + $0x138] sm:$0xff] %v1887
          %2016 = vst [vmem:[%s232 + $0x140] sm:$0xff] %v1888
          %2017 = vst [vmem:[%s232 + $0x148] sm:$0xff] %v1889
          %2018 = vst [vmem:[%s232 + $0x150] sm:$0xff] %v1890
          %2019 = vst [vmem:[%s232 + $0x158] sm:$0xff] %v1891
          %2020 = vst [vmem:[%s232 + $0x160] sm:$0xff] %v1892
          %2021 = vst [vmem:[%s232 + $0x168] sm:$0xff] %v1893
          %2022 = vst [vmem:[%s232 + $0x170] sm:$0xff] %v1894
          %2023 = vst [vmem:[%s232 + $0x178] sm:$0xff] %v1895
          %2024 = vst [vmem:[%s232 + $0x180] sm:$0xff] %v1896
          %2025 = vst [vmem:[%s232 + $0x188] sm:$0xff] %v1897
          %2026 = vst [vmem:[%s232 + $0x190] sm:$0xff] %v1898
          %2027 = vst [vmem:[%s232 + $0x198] sm:$0xff] %v1899
          %2028 = vst [vmem:[%s232 + $0x1a0] sm:$0xff] %v1900
          %2029 = vst [vmem:[%s232 + $0x1a8] sm:$0xff] %v1901
          %2030 = vst [vmem:[%s232 + $0x1b0] sm:$0xff] %v1902
          %2031 = vst [vmem:[%s232 + $0x1b8] sm:$0xff] %v1903
          %2032 = vst [vmem:[%s232 + $0x1c0] sm:$0xff] %v1904
          %2033 = vst [vmem:[%s232 + $0x1c8] sm:$0xff] %v1905
          %2034 = vst [vmem:[%s232 + $0x1d0] sm:$0xff] %v1906
          %2035 = vst [vmem:[%s232 + $0x1d8] sm:$0xff] %v1907
          %2036 = vst [vmem:[%s232 + $0x1e0] sm:$0xff] %v1908
          %2037 = vst [vmem:[%s232 + $0x1e8] sm:$0xff] %v1909
          %2038 = vst [vmem:[%s232 + $0x1f0] sm:$0xff] %v1910
          %2039 = vst [vmem:[%s232 + $0x1f8] sm:$0xff] %v1911
        $region44: #{tpu_custom_call.1} parent=27 // pred_fallthru
          _
        %s2040 = sand.u32 %s107, 1
        %s2041 = scalar_lea.sflag [#allocation5], %s2040
        %s2042 = sand.u32 %s107, 1
        %s2043 = smul.addr %s2042, 512
        %s2044 = scalar_lea.vmem [#allocation8], %s2043
        // Predicated region
        $region45: #{tpu_custom_call.1} parent=27 // pred_check
          %p2045 = pneg %p117
        $region46: #{tpu_custom_call.1} parent=27 // pred_check_branch
          %2047 = sbr.rel (%p2045) target = $region48
        $region47: #{tpu_custom_call.1} parent=27 // pred_region
          %s2048 = smul.u32 32, %s27
          %s2049 = smul.u32 4, %s28
          %s2051 = ssub.s32 8192, 8192
          %2052 = vsyncadd %s2041, %s2051
          %s2053 = smul.addr %s2048, 12
          %s2054 = sadd.s32 %s2049, %s2053
          %s2055 = smul.addr %s2054, 64
          %s2056 = scalar_lea.hbm %s2, %s2055
          %s2057 = sshll.u32 %s2044, 4
          %s2058 = int_to_ptr.vmem [resolvable:$true] %s2057
          %2063 = dma.vmem_to_hbm [thread:$0]  %s2058, 8192, %s2056, %s2041, 256, 768, 16
        $region48: #{tpu_custom_call.1} parent=27 // pred_fallthru
          _
      $region28: #{tpu_custom_call.1} parent=5 // pred_fallthru
        _
      %p2064 = scmp.le.s32.totalorder 2, %s17
      // Predicated region
      $region49: #{tpu_custom_call.1} parent=5 // pred_check
        %p2065 = pneg %p2064
      $region50: #{tpu_custom_call.1} parent=5 // pred_check_branch
        %2067 = sbr.rel (%p2065) target = $region52
      $region51: #{tpu_custom_call.1} parent=5 // pred_region
        %s2068 = ssub.s32 %s17, 2
        // Predicated region
        $region53: #{tpu_custom_call.1} parent=51 // pred_check
          %p2069 = pneg %p123
        $region54: #{tpu_custom_call.1} parent=51 // pred_check_branch
          %2071 = sbr.rel (%p2069) target = $region56
        $region55: #{tpu_custom_call.1} parent=51 // pred_region
          %s2072 = sand.u32 %s108, 1
          %s2073 = scalar_lea.sflag [#allocation5], %s2072
          %s2074 = sand.u32 %s108, 1
          %s2075 = smul.addr %s2074, 512
          %s2076 = scalar_lea.vmem [#allocation8], %s2075
          %2077 = dma.done %s2073, 8192
        $region56: #{tpu_custom_call.1} parent=51 // pred_fallthru
          _
      $region52: #{tpu_custom_call.1} parent=5 // pred_fallthru
        _
    $region6: #{tpu_custom_call.1} parent=1 // loop_footer
      %s21 = sadd.s32 1, %s17
    $region7: #{tpu_custom_call.1} parent=1 // loop_footer_branch
      %16 = sbr.rel target = $region3
    $region8: #{tpu_custom_call.1} parent=1 // loop_exit
      _
    %2078 = vsyncpa [#allocation4], 1
    %s2079 = scalar_lea.sflag [#allocation4], 1
    %2080 = vsyncpa %s2079, 1
    %2081 = vsyncpa [#allocation7], 1
    %s2082 = scalar_lea.sflag [#allocation7], 1
    %2083 = vsyncpa %s2082, 1
    %2084 = vsyncpa [#allocation5], 1
    %s2085 = scalar_lea.sflag [#allocation5], 1
    %2086 = vsyncpa %s2085, 1

</llo_original>
